<compile_context>
chip_gen: v7x
topology: tpu7x:2x2x1
jax: 0.10.0
libtpu: 0.0.40
codegen_flags: <defaults>
</compile_context>

<pallas_src>
import functools

import jax
import jax.numpy as jnp
from jax.experimental import pallas as pl
from jax.experimental.pallas import tpu as pltpu


# ----------------------------- helpers ---------------------------------------
def _round_up(x, m):
    return (x + m - 1) // m * m


def _choose_tile_m(m, k, cout, *, out_bytes, budget_bytes=8 * 1024 * 1024):
    """Largest M-tile (multiple of 16, capped at 1024) such that the
    double-buffered input/output tiles plus the VMEM-resident weights fit a
    conservative budget (safe under v5e's 16 MiB default scoped-VMEM limit and
    v7x's 64 MiB physical / 32 MiB default)."""
    weight_bytes = k * cout * 2 + cout * 4          # bf16 weights + f32 bias
    per_row = 2 * (k * 2 + cout * out_bytes)        # 2x-buffered in + out rows
    cap = max(16, min(1024, (budget_bytes - weight_bytes) // per_row) // 16 * 16)
    return min(cap, _round_up(m, 8))


# ----------------------------- Pallas kernels --------------------------------
def _gemm_bias_act_kernel(p_ref, w_ref, b_ref, o_ref, *, apply_act, neg_slope):
    # Fused: (M-tile of im2col patches) @ W + bias  [+ LeakyReLU].
    acc = jnp.dot(p_ref[...], w_ref[...], preferred_element_type=jnp.float32)
    acc = acc + b_ref[...]                          # (TM, Cp) + (1, Cp)
    if apply_act:
        acc = jnp.where(acc >= 0.0, acc, acc * neg_slope)
    o_ref[...] = acc.astype(o_ref.dtype)


def _head_kernel(*refs, n_pos, neg_slope):
    # Fused tail: conv3 GEMM + bias + LeakyReLU + conv4 GEMM + bias, all in VMEM.
    # p_refs[r] holds the conv3 patches for output spatial position r (row-major
    # over the 2x2 conv3 output), w4_ref[r] the matching (C3, C4) weight block.
    p_refs = refs[:n_pos]
    w3_ref, b3_ref, w4_ref, b4_ref, o_ref = refs[n_pos:]
    tb, c4 = o_ref.shape
    acc = jnp.zeros((tb, c4), jnp.float32) + b4_ref[...]
    for r, p_ref in enumerate(p_refs):
        h = jnp.dot(p_ref[...], w3_ref[...], preferred_element_type=jnp.float32)
        h = h + b3_ref[...]
        h = jnp.where(h >= 0.0, h, h * neg_slope)
        acc = acc + jnp.dot(h.astype(w4_ref.dtype), w4_ref[r],
                            preferred_element_type=jnp.float32)
    o_ref[...] = acc.astype(o_ref.dtype)


# ----------------------------- conv as tiled GEMM -----------------------------
def conv_gemm(patches, w_flat, bias, *, apply_act, out_dtype, neg_slope=0.2):
    m, k = patches.shape
    cout = w_flat.shape[1]
    kp = _round_up(k, 128)                 # MXU/lane-aligned K
    cp = _round_up(cout, 128)              # lane-dense output columns
    out_bytes = jnp.dtype(out_dtype).itemsize
    tm = _choose_tile_m(m, kp, cp, out_bytes=out_bytes)
    mp = _round_up(m, tm)

    p = jnp.pad(patches.astype(jnp.bfloat16), ((0, mp - m), (0, kp - k)))
    w = jnp.pad(w_flat.astype(jnp.bfloat16), ((0, kp - k), (0, cp - cout)))
    b = jnp.pad(bias.astype(jnp.float32).reshape(1, cout), ((0, 0), (0, cp - cout)))

    kernel = functools.partial(_gemm_bias_act_kernel, apply_act=apply_act,
                               neg_slope=neg_slope)
    out = pl.pallas_call(
        kernel,
        out_shape=jax.ShapeDtypeStruct((mp, cp), out_dtype),
        grid=(mp // tm,),
        in_specs=[
            pl.BlockSpec((tm, kp), lambda i: (i, 0)),   # patches: tiled over M
            pl.BlockSpec((kp, cp), lambda i: (0, 0)),   # weights: VMEM-resident
            pl.BlockSpec((1, cp), lambda i: (0, 0)),    # bias:    VMEM-resident
        ],
        out_specs=pl.BlockSpec((tm, cp), lambda i: (i, 0)),
        compiler_params=pltpu.CompilerParams(
            dimension_semantics=("parallel",)),         # megacore split on v7x
    )(p, w, b)
    return out[:m, :cout]


# ------------------------------ JAX glue --------------------------------------
def im2col(x, k, stride, pad):
    # x: (N, H, W, C) NHWC.  Column order is (i, j, c) — matches the
    # (kh, kw, Cin, Cout) weight flattening below.
    if pad > 0:
        x = jnp.pad(x, ((0, 0), (pad, pad), (pad, pad), (0, 0)))
    N, H, W, C = x.shape
    Ho = (H - k) // stride + 1
    Wo = (W - k) // stride + 1
    cols = []
    for i in range(k):
        for j in range(k):
            cols.append(
                x[:, i:i + stride * Ho:stride, j:j + stride * Wo:stride, :]
            )
    patches = jnp.concatenate(cols, axis=-1)            # (N, Ho, Wo, k*k*C)
    return patches.reshape(N * Ho * Wo, k * k * C), (N, Ho, Wo)


def conv2d_pallas(x, w, b, *, stride, pad, apply_act, out_dtype=jnp.bfloat16):
    # w: (kh, kw, Cin, Cout)
    kh, kw, Cin, Cout = w.shape
    patches, (N, Ho, Wo) = im2col(x, kh, stride, pad)
    w_flat = w.reshape(kh * kw * Cin, Cout)
    y = conv_gemm(patches, w_flat, b, apply_act=apply_act, out_dtype=out_dtype)
    return y.reshape(N, Ho, Wo, Cout)


def head_fused(x2, w3, b3, w4, b4, *, neg_slope=0.2):
    # Fuses conv3 (4x4, stride 2, pad 0) + LeakyReLU + conv4 (2x2, stride 1) in
    # ONE pallas_call.  conv3's 2x2 output never touches HBM.
    N = x2.shape[0]
    kh3, _, _, C3 = w3.shape
    kh4, kw4, _, C4 = w4.shape
    patches, (_, Ho, Wo) = im2col(x2, kh3, 2, 0)         # (N*Ho*Wo, K3)
    assert (Ho, Wo) == (kh4, kw4), "final conv must consume the full spatial extent"
    K3 = patches.shape[1]
    K3p = _round_up(K3, 128)
    C3p = _round_up(C3, 128)
    C4p = _round_up(C4, 128)
    TB = max(8, min(256, _round_up(N, 8)))               # batch tile
    Np = _round_up(N, TB)

    p4d = patches.reshape(N, Ho * Wo, K3).astype(jnp.bfloat16)
    p4d = jnp.pad(p4d, ((0, Np - N), (0, 0), (0, K3p - K3)))
    p_list = [p4d[:, r, :] for r in range(Ho * Wo)]      # one (Np, K3p) per position

    w3f = jnp.pad(w3.reshape(K3, C3).astype(jnp.bfloat16),
                  ((0, K3p - K3), (0, C3p - C3)))
    b3f = jnp.pad(b3.astype(jnp.float32).reshape(1, C3), ((0, 0), (0, C3p - C3)))
    # (kh4, kw4, C3, C4) -> (kh4*kw4, C3, C4): block r matches patch position r.
    w4f = jnp.pad(w4.reshape(kh4 * kw4, C3, C4).astype(jnp.bfloat16),
                  ((0, 0), (0, C3p - C3), (0, C4p - C4)))
    b4f = jnp.pad(b4.astype(jnp.float32).reshape(1, C4), ((0, 0), (0, C4p - C4)))

    kernel = functools.partial(_head_kernel, n_pos=Ho * Wo, neg_slope=neg_slope)
    out = pl.pallas_call(
        kernel,
        out_shape=jax.ShapeDtypeStruct((Np, C4p), jnp.float32),
        grid=(Np // TB,),
        in_specs=[pl.BlockSpec((TB, K3p), lambda i: (i, 0))] * (Ho * Wo) + [
            pl.BlockSpec((K3p, C3p), lambda i: (0, 0)),
            pl.BlockSpec((1, C3p), lambda i: (0, 0)),
            pl.BlockSpec((kh4 * kw4, C3p, C4p), lambda i: (0, 0, 0)),
            pl.BlockSpec((1, C4p), lambda i: (0, 0)),
        ],
        out_specs=pl.BlockSpec((TB, C4p), lambda i: (i, 0)),
        compiler_params=pltpu.CompilerParams(
            dimension_semantics=("parallel",)),
    )(*p_list, w3f, b3f, w4f, b4f)
    return out[:N, :C4]


# ------------------------------ model -----------------------------------------
_STRIDES = (2, 2, 2, 1)
_PADS = (1, 1, 0, 0)
_ACTS = (True, True, True, False)   # LeakyReLU(0.2) after all but the last conv


def init_params(key, input_size, hidden_size, output_size):
    # Matches the module init: Conv2d weights ~ N(0, 0.02), biases zero.
    # PyTorch layout is (Cout, Cin, kh, kw); we keep (kh, kw, Cin, Cout).
    cfgs = [
        (input_size, hidden_size, 4),
        (hidden_size, hidden_size * 2, 4),
        (hidden_size * 2, hidden_size * 4, 4),
        (hidden_size * 4, output_size, 2),
    ]
    params = []
    for cin, cout, k in cfgs:
        key, sub = jax.random.split(key)
        w = 0.02 * jax.random.normal(sub, (k, k, cin, cout), dtype=jnp.float32)
        b = jnp.zeros((cout,), dtype=jnp.float32)
        params.append((w, b))
    return params


def conv_discriminator_forward(x_nchw, params, output_size):
    # x_nchw: (N, C, H, W) — PyTorch convention.  last_activation=None (default).
    x = jnp.transpose(x_nchw, (0, 2, 3, 1)).astype(jnp.bfloat16)   # NHWC, bf16
    (w1, b1), (w2, b2), (w3, b3), (w4, b4) = params
    x = conv2d_pallas(x, w1, b1, stride=2, pad=1, apply_act=True)
    x = conv2d_pallas(x, w2, b2, stride=2, pad=1, apply_act=True)
    out = head_fused(x, w3, b3, w4, b4)        # fused conv3 + LeakyReLU + conv4
    # Last conv yields 1x1 spatial, so this matches torch's .view(-1, output_size).
    return out.reshape(-1, output_size)


def reference_forward(x_nchw, params, output_size):
    # Pure-JAX reference (lax conv) with identical bf16 rounding of the GEMM
    # operands and f32 accumulation, for an apples-to-apples check.
    x = jnp.transpose(x_nchw, (0, 2, 3, 1)).astype(jnp.bfloat16)
    n_layers = len(params)
    for idx, ((w, b), s, p, a) in enumerate(zip(params, _STRIDES, _PADS, _ACTS)):
        y = jax.lax.conv_general_dilated(
            x, w.astype(jnp.bfloat16), window_strides=(s, s),
            padding=[(p, p), (p, p)],
            dimension_numbers=("NHWC", "HWIO", "NHWC"),
            preferred_element_type=jnp.float32,
        )
        y = y + b
        if a:
            y = jnp.where(y >= 0.0, y, 0.2 * y)
        x = y.astype(jnp.bfloat16) if idx < n_layers - 1 else y
    return x.reshape(-1, output_size)


if __name__ == "__main__":
    # Small shapes consistent with the module: spatial 24 -> 12 -> 6 -> 2 -> 1.
    batch, input_size, hidden_size, output_size = 2, 3, 8, 1
    H = W = 24

    key = jax.random.PRNGKey(0)
    key, xkey = jax.random.split(key)
    x = jax.random.normal(xkey, (batch, input_size, H, W), dtype=jnp.float32)

    params = init_params(key, input_size, hidden_size, output_size)

    fwd = jax.jit(functools.partial(conv_discriminator_forward,
                                    output_size=output_size))
    out = jax.block_until_ready(fwd(x, params))
    ref = jax.block_until_ready(reference_forward(x, params, output_size))

    assert out.shape == (batch, output_size), out.shape
    assert jnp.allclose(out, ref, atol=1e-4, rtol=1e-2), (out, ref)

    print("KERNEL_OK")
</pallas_src>

<mosaic_0001>
module attributes {stable_mosaic.version = 11 : i64} {
  func.func @_gemm_bias_act_kernel(%arg0: i32, %arg1: memref<288x128xbf16, #tpu.memory_space<vmem>>, %arg2: memref<128x128xbf16, #tpu.memory_space<vmem>>, %arg3: memref<1x128xf32, #tpu.memory_space<vmem>>, %arg4: memref<288x128xbf16, #tpu.memory_space<vmem>>) attributes {dimension_semantics = [#tpu.dimension_semantics<parallel>], iteration_bounds = array<i64: 1>, scalar_prefetch = 0 : i64, scratch_operands = 0 : i64, tpu.core_type = #tpu.core_type<tc>, window_params = [{transform_indices = @transform_0, window_bounds = array<i64: 288, 128>}, {pipeline_mode = #tpu.pipeline_mode<synchronous>, transform_indices = @transform_1, window_bounds = array<i64: 128, 128>}, {pipeline_mode = #tpu.pipeline_mode<synchronous>, transform_indices = @transform_2, window_bounds = array<i64: 1, 128>}, {transform_indices = @transform_3, window_bounds = array<i64: 288, 128>}]} {
    %c0 = arith.constant 0 : index
    %c0_0 = arith.constant 0 : index
    %0 = vector.load %arg1[%c0, %c0_0] : memref<288x128xbf16, #tpu.memory_space<vmem>>, vector<288x128xbf16>
    %c0_1 = arith.constant 0 : index
    %c0_2 = arith.constant 0 : index
    %1 = vector.load %arg2[%c0_1, %c0_2] : memref<128x128xbf16, #tpu.memory_space<vmem>>, vector<128x128xbf16>
    %cst = arith.constant dense<0.000000e+00> : vector<288x128xf32>
    %2 = tpu.matmul %0, %1, %cst {dimension_numbers = #tpu.dot_dimension_numbers<[1], [0], [0], [1], [0, 0, 1, 1], [], []>} : vector<288x128xbf16>, vector<128x128xbf16>, vector<288x128xf32> -> vector<288x128xf32>
    %c0_3 = arith.constant 0 : index
    %c0_4 = arith.constant 0 : index
    %3 = vector.load %arg3[%c0_3, %c0_4] : memref<1x128xf32, #tpu.memory_space<vmem>>, vector<1x128xf32>
    %4 = vector.broadcast %3 : vector<1x128xf32> to vector<288x128xf32>
    %5 = arith.addf %2, %4 : vector<288x128xf32>
    %cst_5 = arith.constant 0.000000e+00 : f32
    %6 = vector.broadcast %cst_5 : f32 to vector<288x128xf32>
    %7 = arith.cmpf oge, %5, %6 : vector<288x128xf32>
    %cst_6 = arith.constant 2.000000e-01 : f32
    %8 = vector.broadcast %cst_6 : f32 to vector<288x128xf32>
    %9 = arith.mulf %5, %8 : vector<288x128xf32>
    %10 = arith.select %7, %5, %9 : vector<288x128xi1>, vector<288x128xf32>
    %11 = arith.truncf %10 : vector<288x128xf32> to vector<288x128xbf16>
    %c0_7 = arith.constant 0 : index
    %c0_8 = arith.constant 0 : index
    %12 = vector.load %arg4[%c0_7, %c0_8] : memref<288x128xbf16, #tpu.memory_space<vmem>>, vector<288x128xbf16>
    tpu.vector_store %arg4[%c0_7, %c0_8], %11 {strides = array<i32>} : memref<288x128xbf16, #tpu.memory_space<vmem>>, vector<288x128xbf16>,
    return
  }
  func.func @transform_0(%arg0: i32) -> (i32, i32) {
    %c0_i32 = arith.constant 0 : i32
    %c0_i32_0 = arith.constant 0 : i32
    return %arg0, %c0_i32 : i32, i32
  }
  func.func @transform_1(%arg0: i32) -> (i32, i32) {
    %c0_i32 = arith.constant 0 : i32
    %c0_i32_0 = arith.constant 0 : i32
    %c0_i32_1 = arith.constant 0 : i32
    return %c0_i32, %c0_i32_0 : i32, i32
  }
  func.func @transform_2(%arg0: i32) -> (i32, i32) {
    %c0_i32 = arith.constant 0 : i32
    %c0_i32_0 = arith.constant 0 : i32
    %c0_i32_1 = arith.constant 0 : i32
    return %c0_i32, %c0_i32_0 : i32, i32
  }
  func.func @transform_3(%arg0: i32) -> (i32, i32) {
    %c0_i32 = arith.constant 0 : i32
    %c0_i32_0 = arith.constant 0 : i32
    return %arg0, %c0_i32 : i32, i32
  }
}

module attributes {stable_mosaic.version = 11 : i64} {
  func.func @_gemm_bias_act_kernel(%arg0: i32, %arg1: memref<72x128xbf16, #tpu.memory_space<vmem>>, %arg2: memref<128x128xbf16, #tpu.memory_space<vmem>>, %arg3: memref<1x128xf32, #tpu.memory_space<vmem>>, %arg4: memref<72x128xbf16, #tpu.memory_space<vmem>>) attributes {dimension_semantics = [#tpu.dimension_semantics<parallel>], iteration_bounds = array<i64: 1>, scalar_prefetch = 0 : i64, scratch_operands = 0 : i64, tpu.core_type = #tpu.core_type<tc>, window_params = [{transform_indices = @transform_0, window_bounds = array<i64: 72, 128>}, {pipeline_mode = #tpu.pipeline_mode<synchronous>, transform_indices = @transform_1, window_bounds = array<i64: 128, 128>}, {pipeline_mode = #tpu.pipeline_mode<synchronous>, transform_indices = @transform_2, window_bounds = array<i64: 1, 128>}, {transform_indices = @transform_3, window_bounds = array<i64: 72, 128>}]} {
    %c0 = arith.constant 0 : index
    %c0_0 = arith.constant 0 : index
    %0 = vector.load %arg1[%c0, %c0_0] : memref<72x128xbf16, #tpu.memory_space<vmem>>, vector<72x128xbf16>
    %c0_1 = arith.constant 0 : index
    %c0_2 = arith.constant 0 : index
    %1 = vector.load %arg2[%c0_1, %c0_2] : memref<128x128xbf16, #tpu.memory_space<vmem>>, vector<128x128xbf16>
    %cst = arith.constant dense<0.000000e+00> : vector<72x128xf32>
    %2 = tpu.matmul %0, %1, %cst {dimension_numbers = #tpu.dot_dimension_numbers<[1], [0], [0], [1], [0, 0, 1, 1], [], []>} : vector<72x128xbf16>, vector<128x128xbf16>, vector<72x128xf32> -> vector<72x128xf32>
    %c0_3 = arith.constant 0 : index
    %c0_4 = arith.constant 0 : index
    %3 = vector.load %arg3[%c0_3, %c0_4] : memref<1x128xf32, #tpu.memory_space<vmem>>, vector<1x128xf32>
    %4 = vector.broadcast %3 : vector<1x128xf32> to vector<72x128xf32>
    %5 = arith.addf %2, %4 : vector<72x128xf32>
    %cst_5 = arith.constant 0.000000e+00 : f32
    %6 = vector.broadcast %cst_5 : f32 to vector<72x128xf32>
    %7 = arith.cmpf oge, %5, %6 : vector<72x128xf32>
    %cst_6 = arith.constant 2.000000e-01 : f32
    %8 = vector.broadcast %cst_6 : f32 to vector<72x128xf32>
    %9 = arith.mulf %5, %8 : vector<72x128xf32>
    %10 = arith.select %7, %5, %9 : vector<72x128xi1>, vector<72x128xf32>
    %11 = arith.truncf %10 : vector<72x128xf32> to vector<72x128xbf16>
    %c0_7 = arith.constant 0 : index
    %c0_8 = arith.constant 0 : index
    %12 = vector.load %arg4[%c0_7, %c0_8] : memref<72x128xbf16, #tpu.memory_space<vmem>>, vector<72x128xbf16>
    tpu.vector_store %arg4[%c0_7, %c0_8], %11 {strides = array<i32>} : memref<72x128xbf16, #tpu.memory_space<vmem>>, vector<72x128xbf16>,
    return
  }
  func.func @transform_0(%arg0: i32) -> (i32, i32) {
    %c0_i32 = arith.constant 0 : i32
    %c0_i32_0 = arith.constant 0 : i32
    return %arg0, %c0_i32 : i32, i32
  }
  func.func @transform_1(%arg0: i32) -> (i32, i32) {
    %c0_i32 = arith.constant 0 : i32
    %c0_i32_0 = arith.constant 0 : i32
    %c0_i32_1 = arith.constant 0 : i32
    return %c0_i32, %c0_i32_0 : i32, i32
  }
  func.func @transform_2(%arg0: i32) -> (i32, i32) {
    %c0_i32 = arith.constant 0 : i32
    %c0_i32_0 = arith.constant 0 : i32
    %c0_i32_1 = arith.constant 0 : i32
    return %c0_i32, %c0_i32_0 : i32, i32
  }
  func.func @transform_3(%arg0: i32) -> (i32, i32) {
    %c0_i32 = arith.constant 0 : i32
    %c0_i32_0 = arith.constant 0 : i32
    return %arg0, %c0_i32 : i32, i32
  }
}

module attributes {stable_mosaic.version = 11 : i64} {
  func.func @_head_kernel(%arg0: i32, %arg1: memref<8x256xbf16, #tpu.memory_space<vmem>>, %arg2: memref<8x256xbf16, #tpu.memory_space<vmem>>, %arg3: memref<8x256xbf16, #tpu.memory_space<vmem>>, %arg4: memref<8x256xbf16, #tpu.memory_space<vmem>>, %arg5: memref<256x128xbf16, #tpu.memory_space<vmem>>, %arg6: memref<1x128xf32, #tpu.memory_space<vmem>>, %arg7: memref<4x128x128xbf16, #tpu.memory_space<vmem>>, %arg8: memref<1x128xf32, #tpu.memory_space<vmem>>, %arg9: memref<8x128xf32, #tpu.memory_space<vmem>>) attributes {dimension_semantics = [#tpu.dimension_semantics<parallel>], iteration_bounds = array<i64: 1>, scalar_prefetch = 0 : i64, scratch_operands = 0 : i64, tpu.core_type = #tpu.core_type<tc>, window_params = [{transform_indices = @transform_0, window_bounds = array<i64: 8, 256>}, {transform_indices = @transform_1, window_bounds = array<i64: 8, 256>}, {transform_indices = @transform_2, window_bounds = array<i64: 8, 256>}, {transform_indices = @transform_3, window_bounds = array<i64: 8, 256>}, {pipeline_mode = #tpu.pipeline_mode<synchronous>, transform_indices = @transform_4, window_bounds = array<i64: 256, 128>}, {pipeline_mode = #tpu.pipeline_mode<synchronous>, transform_indices = @transform_5, window_bounds = array<i64: 1, 128>}, {pipeline_mode = #tpu.pipeline_mode<synchronous>, transform_indices = @transform_6, window_bounds = array<i64: 4, 128, 128>}, {pipeline_mode = #tpu.pipeline_mode<synchronous>, transform_indices = @transform_7, window_bounds = array<i64: 1, 128>}, {transform_indices = @transform_8, window_bounds = array<i64: 8, 128>}]} {
    %cst = arith.constant 0.000000e+00 : f32
    %0 = vector.broadcast %cst : f32 to vector<8x128xf32>
    %c0 = arith.constant 0 : index
    %c0_0 = arith.constant 0 : index
    %1 = vector.load %arg8[%c0, %c0_0] : memref<1x128xf32, #tpu.memory_space<vmem>>, vector<1x128xf32>
    %2 = vector.broadcast %1 : vector<1x128xf32> to vector<8x128xf32>
    %3 = arith.addf %0, %2 : vector<8x128xf32>
    %c0_1 = arith.constant 0 : index
    %c0_2 = arith.constant 0 : index
    %4 = vector.load %arg1[%c0_1, %c0_2] : memref<8x256xbf16, #tpu.memory_space<vmem>>, vector<8x256xbf16>
    %c0_3 = arith.constant 0 : index
    %c0_4 = arith.constant 0 : index
    %5 = vector.load %arg5[%c0_3, %c0_4] : memref<256x128xbf16, #tpu.memory_space<vmem>>, vector<256x128xbf16>
    %cst_5 = arith.constant dense<0.000000e+00> : vector<8x128xf32>
    %6 = tpu.matmul %4, %5, %cst_5 {dimension_numbers = #tpu.dot_dimension_numbers<[1], [0], [0], [1], [0, 0, 1, 1], [], []>} : vector<8x256xbf16>, vector<256x128xbf16>, vector<8x128xf32> -> vector<8x128xf32>
    %c0_6 = arith.constant 0 : index
    %c0_7 = arith.constant 0 : index
    %7 = vector.load %arg6[%c0_6, %c0_7] : memref<1x128xf32, #tpu.memory_space<vmem>>, vector<1x128xf32>
    %8 = vector.broadcast %7 : vector<1x128xf32> to vector<8x128xf32>
    %9 = arith.addf %6, %8 : vector<8x128xf32>
    %cst_8 = arith.constant 0.000000e+00 : f32
    %10 = vector.broadcast %cst_8 : f32 to vector<8x128xf32>
    %11 = arith.cmpf oge, %9, %10 : vector<8x128xf32>
    %cst_9 = arith.constant 2.000000e-01 : f32
    %12 = vector.broadcast %cst_9 : f32 to vector<8x128xf32>
    %13 = arith.mulf %9, %12 : vector<8x128xf32>
    %14 = arith.select %11, %9, %13 : vector<8x128xi1>, vector<8x128xf32>
    %15 = arith.truncf %14 : vector<8x128xf32> to vector<8x128xbf16>
    %c0_10 = arith.constant 0 : index
    %c0_11 = arith.constant 0 : index
    %c0_12 = arith.constant 0 : index
    %16 = vector.load %arg7[%c0_10, %c0_11, %c0_12] : memref<4x128x128xbf16, #tpu.memory_space<vmem>>, vector<1x128x128xbf16>
    %17 = vector.shape_cast %16 : vector<1x128x128xbf16> to vector<128x128xbf16>
    %cst_13 = arith.constant dense<0.000000e+00> : vector<8x128xf32>
    %18 = tpu.matmul %15, %17, %cst_13 {dimension_numbers = #tpu.dot_dimension_numbers<[1], [0], [0], [1], [0, 0, 1, 1], [], []>} : vector<8x128xbf16>, vector<128x128xbf16>, vector<8x128xf32> -> vector<8x128xf32>
    %19 = arith.addf %3, %18 : vector<8x128xf32>
    %c0_14 = arith.constant 0 : index
    %c0_15 = arith.constant 0 : index
    %20 = vector.load %arg2[%c0_14, %c0_15] : memref<8x256xbf16, #tpu.memory_space<vmem>>, vector<8x256xbf16>
    %c0_16 = arith.constant 0 : index
    %c0_17 = arith.constant 0 : index
    %21 = vector.load %arg5[%c0_16, %c0_17] : memref<256x128xbf16, #tpu.memory_space<vmem>>, vector<256x128xbf16>
    %cst_18 = arith.constant dense<0.000000e+00> : vector<8x128xf32>
    %22 = tpu.matmul %20, %21, %cst_18 {dimension_numbers = #tpu.dot_dimension_numbers<[1], [0], [0], [1], [0, 0, 1, 1], [], []>} : vector<8x256xbf16>, vector<256x128xbf16>, vector<8x128xf32> -> vector<8x128xf32>
    %c0_19 = arith.constant 0 : index
    %c0_20 = arith.constant 0 : index
    %23 = vector.load %arg6[%c0_19, %c0_20] : memref<1x128xf32, #tpu.memory_space<vmem>>, vector<1x128xf32>
    %24 = vector.broadcast %23 : vector<1x128xf32> to vector<8x128xf32>
    %25 = arith.addf %22, %24 : vector<8x128xf32>
    %cst_21 = arith.constant 0.000000e+00 : f32
    %26 = vector.broadcast %cst_21 : f32 to vector<8x128xf32>
    %27 = arith.cmpf oge, %25, %26 : vector<8x128xf32>
    %cst_22 = arith.constant 2.000000e-01 : f32
    %28 = vector.broadcast %cst_22 : f32 to vector<8x128xf32>
    %29 = arith.mulf %25, %28 : vector<8x128xf32>
    %30 = arith.select %27, %25, %29 : vector<8x128xi1>, vector<8x128xf32>
    %31 = arith.truncf %30 : vector<8x128xf32> to vector<8x128xbf16>
    %c1 = arith.constant 1 : index
    %c0_23 = arith.constant 0 : index
    %c0_24 = arith.constant 0 : index
    %32 = vector.load %arg7[%c1, %c0_23, %c0_24] : memref<4x128x128xbf16, #tpu.memory_space<vmem>>, vector<1x128x128xbf16>
    %33 = vector.shape_cast %32 : vector<1x128x128xbf16> to vector<128x128xbf16>
    %cst_25 = arith.constant dense<0.000000e+00> : vector<8x128xf32>
    %34 = tpu.matmul %31, %33, %cst_25 {dimension_numbers = #tpu.dot_dimension_numbers<[1], [0], [0], [1], [0, 0, 1, 1], [], []>} : vector<8x128xbf16>, vector<128x128xbf16>, vector<8x128xf32> -> vector<8x128xf32>
    %35 = arith.addf %19, %34 : vector<8x128xf32>
    %c0_26 = arith.constant 0 : index
    %c0_27 = arith.constant 0 : index
    %36 = vector.load %arg3[%c0_26, %c0_27] : memref<8x256xbf16, #tpu.memory_space<vmem>>, vector<8x256xbf16>
    %c0_28 = arith.constant 0 : index
    %c0_29 = arith.constant 0 : index
    %37 = vector.load %arg5[%c0_28, %c0_29] : memref<256x128xbf16, #tpu.memory_space<vmem>>, vector<256x128xbf16>
    %cst_30 = arith.constant dense<0.000000e+00> : vector<8x128xf32>
    %38 = tpu.matmul %36, %37, %cst_30 {dimension_numbers = #tpu.dot_dimension_numbers<[1], [0], [0], [1], [0, 0, 1, 1], [], []>} : vector<8x256xbf16>, vector<256x128xbf16>, vector<8x128xf32> -> vector<8x128xf32>
    %c0_31 = arith.constant 0 : index
    %c0_32 = arith.constant 0 : index
    %39 = vector.load %arg6[%c0_31, %c0_32] : memref<1x128xf32, #tpu.memory_space<vmem>>, vector<1x128xf32>
    %40 = vector.broadcast %39 : vector<1x128xf32> to vector<8x128xf32>
    %41 = arith.addf %38, %40 : vector<8x128xf32>
    %cst_33 = arith.constant 0.000000e+00 : f32
    %42 = vector.broadcast %cst_33 : f32 to vector<8x128xf32>
    %43 = arith.cmpf oge, %41, %42 : vector<8x128xf32>
    %cst_34 = arith.constant 2.000000e-01 : f32
    %44 = vector.broadcast %cst_34 : f32 to vector<8x128xf32>
    %45 = arith.mulf %41, %44 : vector<8x128xf32>
    %46 = arith.select %43, %41, %45 : vector<8x128xi1>, vector<8x128xf32>
    %47 = arith.truncf %46 : vector<8x128xf32> to vector<8x128xbf16>
    %c2 = arith.constant 2 : index
    %c0_35 = arith.constant 0 : index
    %c0_36 = arith.constant 0 : index
    %48 = vector.load %arg7[%c2, %c0_35, %c0_36] : memref<4x128x128xbf16, #tpu.memory_space<vmem>>, vector<1x128x128xbf16>
    %49 = vector.shape_cast %48 : vector<1x128x128xbf16> to vector<128x128xbf16>
    %cst_37 = arith.constant dense<0.000000e+00> : vector<8x128xf32>
    %50 = tpu.matmul %47, %49, %cst_37 {dimension_numbers = #tpu.dot_dimension_numbers<[1], [0], [0], [1], [0, 0, 1, 1], [], []>} : vector<8x128xbf16>, vector<128x128xbf16>, vector<8x128xf32> -> vector<8x128xf32>
    %51 = arith.addf %35, %50 : vector<8x128xf32>
    %c0_38 = arith.constant 0 : index
    %c0_39 = arith.constant 0 : index
    %52 = vector.load %arg4[%c0_38, %c0_39] : memref<8x256xbf16, #tpu.memory_space<vmem>>, vector<8x256xbf16>
    %c0_40 = arith.constant 0 : index
    %c0_41 = arith.constant 0 : index
    %53 = vector.load %arg5[%c0_40, %c0_41] : memref<256x128xbf16, #tpu.memory_space<vmem>>, vector<256x128xbf16>
    %cst_42 = arith.constant dense<0.000000e+00> : vector<8x128xf32>
    %54 = tpu.matmul %52, %53, %cst_42 {dimension_numbers = #tpu.dot_dimension_numbers<[1], [0], [0], [1], [0, 0, 1, 1], [], []>} : vector<8x256xbf16>, vector<256x128xbf16>, vector<8x128xf32> -> vector<8x128xf32>
    %c0_43 = arith.constant 0 : index
    %c0_44 = arith.constant 0 : index
    %55 = vector.load %arg6[%c0_43, %c0_44] : memref<1x128xf32, #tpu.memory_space<vmem>>, vector<1x128xf32>
    %56 = vector.broadcast %55 : vector<1x128xf32> to vector<8x128xf32>
    %57 = arith.addf %54, %56 : vector<8x128xf32>
    %cst_45 = arith.constant 0.000000e+00 : f32
    %58 = vector.broadcast %cst_45 : f32 to vector<8x128xf32>
    %59 = arith.cmpf oge, %57, %58 : vector<8x128xf32>
    %cst_46 = arith.constant 2.000000e-01 : f32
    %60 = vector.broadcast %cst_46 : f32 to vector<8x128xf32>
    %61 = arith.mulf %57, %60 : vector<8x128xf32>
    %62 = arith.select %59, %57, %61 : vector<8x128xi1>, vector<8x128xf32>
    %63 = arith.truncf %62 : vector<8x128xf32> to vector<8x128xbf16>
    %c3 = arith.constant 3 : index
    %c0_47 = arith.constant 0 : index
    %c0_48 = arith.constant 0 : index
    %64 = vector.load %arg7[%c3, %c0_47, %c0_48] : memref<4x128x128xbf16, #tpu.memory_space<vmem>>, vector<1x128x128xbf16>
    %65 = vector.shape_cast %64 : vector<1x128x128xbf16> to vector<128x128xbf16>
    %cst_49 = arith.constant dense<0.000000e+00> : vector<8x128xf32>
    %66 = tpu.matmul %63, %65, %cst_49 {dimension_numbers = #tpu.dot_dimension_numbers<[1], [0], [0], [1], [0, 0, 1, 1], [], []>} : vector<8x128xbf16>, vector<128x128xbf16>, vector<8x128xf32> -> vector<8x128xf32>
    %67 = arith.addf %51, %66 : vector<8x128xf32>
    %c0_50 = arith.constant 0 : index
    %c0_51 = arith.constant 0 : index
    %68 = vector.load %arg9[%c0_50, %c0_51] : memref<8x128xf32, #tpu.memory_space<vmem>>, vector<8x128xf32>
    tpu.vector_store %arg9[%c0_50, %c0_51], %67 {strides = array<i32>} : memref<8x128xf32, #tpu.memory_space<vmem>>, vector<8x128xf32>,
    return
  }
  func.func @transform_0(%arg0: i32) -> (i32, i32) {
    %c0_i32 = arith.constant 0 : i32
    %c0_i32_0 = arith.constant 0 : i32
    return %arg0, %c0_i32 : i32, i32
  }
  func.func @transform_1(%arg0: i32) -> (i32, i32) {
    %c0_i32 = arith.constant 0 : i32
    %c0_i32_0 = arith.constant 0 : i32
    return %arg0, %c0_i32 : i32, i32
  }
  func.func @transform_2(%arg0: i32) -> (i32, i32) {
    %c0_i32 = arith.constant 0 : i32
    %c0_i32_0 = arith.constant 0 : i32
    return %arg0, %c0_i32 : i32, i32
  }
  func.func @transform_3(%arg0: i32) -> (i32, i32) {
    %c0_i32 = arith.constant 0 : i32
    %c0_i32_0 = arith.constant 0 : i32
    return %arg0, %c0_i32 : i32, i32
  }
  func.func @transform_4(%arg0: i32) -> (i32, i32) {
    %c0_i32 = arith.constant 0 : i32
    %c0_i32_0 = arith.constant 0 : i32
    %c0_i32_1 = arith.constant 0 : i32
    return %c0_i32, %c0_i32_0 : i32, i32
  }
  func.func @transform_5(%arg0: i32) -> (i32, i32) {
    %c0_i32 = arith.constant 0 : i32
    %c0_i32_0 = arith.constant 0 : i32
    %c0_i32_1 = arith.constant 0 : i32
    return %c0_i32, %c0_i32_0 : i32, i32
  }
  func.func @transform_6(%arg0: i32) -> (i32, i32, i32) {
    %c0_i32 = arith.constant 0 : i32
    %c0_i32_0 = arith.constant 0 : i32
    %c0_i32_1 = arith.constant 0 : i32
    %c0_i32_2 = arith.constant 0 : i32
    return %c0_i32, %c0_i32_0, %c0_i32_1 : i32, i32, i32
  }
  func.func @transform_7(%arg0: i32) -> (i32, i32) {
    %c0_i32 = arith.constant 0 : i32
    %c0_i32_0 = arith.constant 0 : i32
    %c0_i32_1 = arith.constant 0 : i32
    return %c0_i32, %c0_i32_0 : i32, i32
  }
  func.func @transform_8(%arg0: i32) -> (i32, i32) {
    %c0_i32 = arith.constant 0 : i32
    %c0_i32_0 = arith.constant 0 : i32
    return %arg0, %c0_i32 : i32, i32
  }
}

</mosaic_0001>

<llo_original>
// kernel: conv_discriminator_forward.3
$region0: #{conv_discriminator_forward.3}
  #allocation0 [shape = 'u32[]', space=smem, size = 0x4, offset = 0x4, fixed_abs, tag = 'smem constant byte address 0x4 - core index']
  #allocation1 [shape = 'u32[144,128]{1,0:T(1,128)}', space=vmem, size = 0x12000, scoped, tag = 'internal scratch']
  %s0 = inlined_call_operand.vmem [shape: bf16[288,128], index: 0, kind: input, shape index: {}]
  %s1 = inlined_call_operand.vmem [shape: bf16[128,128], index: 1, kind: input, shape index: {}]
  %s2 = inlined_call_operand.vmem [shape: f32[1,128], index: 2, kind: input, shape index: {}]
  %s3 = inlined_call_operand.vmem [shape: bf16[288,128], index: 3, kind: output, shape index: {}]
  %s4 = sld [smem:[#allocation0]]
  $region22: #{conv_discriminator_forward.3} parent=0
    _
  %s6 = ssub.s32 1, %s4
  %s7 = scalar_select 0, %s6, %s4
  // Predicated region
  $region2: #{conv_discriminator_forward.3} parent=0 // pred_check
    _
  $region3: #{conv_discriminator_forward.3} parent=0 // pred_check_branch
    %9 = sbr.rel (0) target = $region5
  $region4: #{conv_discriminator_forward.3} parent=0 // pred_region
    _
  $region5: #{conv_discriminator_forward.3} parent=0 // pred_fallthru
    _
  // Predicated region
  $region6: #{conv_discriminator_forward.3} parent=0 // pred_check
    _
  $region7: #{conv_discriminator_forward.3} parent=0 // pred_check_branch
    %11 = sbr.rel (0) target = $region9
  $region8: #{conv_discriminator_forward.3} parent=0 // pred_region
    _
  $region9: #{conv_discriminator_forward.3} parent=0 // pred_fallthru
    _
  // Predicated region
  $region10: #{conv_discriminator_forward.3} parent=0 // pred_check
    _
  $region11: #{conv_discriminator_forward.3} parent=0 // pred_check_branch
    %13 = sbr.rel (0) target = $region13
  $region12: #{conv_discriminator_forward.3} parent=0 // pred_region
    _
  $region13: #{conv_discriminator_forward.3} parent=0 // pred_fallthru
    _
  %v15 = vld [vmem:[%s0] sm:$0xf]
  %v16 = vld [vmem:[%s0 + $0x4] sm:$0xf]
  %v17 = vld [vmem:[%s0 + $0x8] sm:$0xf]
  %v18 = vld [vmem:[%s0 + $0xc] sm:$0xf]
  %v19 = vld [vmem:[%s0 + $0x10] sm:$0xf]
  %v20 = vld [vmem:[%s0 + $0x14] sm:$0xf]
  %v21 = vld [vmem:[%s0 + $0x18] sm:$0xf]
  %v22 = vld [vmem:[%s0 + $0x1c] sm:$0xf]
  %v23 = vld [vmem:[%s0 + $0x20] sm:$0xf]
  %v24 = vld [vmem:[%s0 + $0x24] sm:$0xf]
  %v25 = vld [vmem:[%s0 + $0x28] sm:$0xf]
  %v26 = vld [vmem:[%s0 + $0x2c] sm:$0xf]
  %v27 = vld [vmem:[%s0 + $0x30] sm:$0xf]
  %v28 = vld [vmem:[%s0 + $0x34] sm:$0xf]
  %v29 = vld [vmem:[%s0 + $0x38] sm:$0xf]
  %v30 = vld [vmem:[%s0 + $0x3c] sm:$0xf]
  %v31 = vld [vmem:[%s0 + $0x40] sm:$0xf]
  %v32 = vld [vmem:[%s0 + $0x44] sm:$0xf]
  %v33 = vld [vmem:[%s0 + $0x48] sm:$0xf]
  %v34 = vld [vmem:[%s0 + $0x4c] sm:$0xf]
  %v35 = vld [vmem:[%s0 + $0x50] sm:$0xf]
  %v36 = vld [vmem:[%s0 + $0x54] sm:$0xf]
  %v37 = vld [vmem:[%s0 + $0x58] sm:$0xf]
  %v38 = vld [vmem:[%s0 + $0x5c] sm:$0xf]
  %v39 = vld [vmem:[%s0 + $0x60] sm:$0xf]
  %v40 = vld [vmem:[%s0 + $0x64] sm:$0xf]
  %v41 = vld [vmem:[%s0 + $0x68] sm:$0xf]
  %v42 = vld [vmem:[%s0 + $0x6c] sm:$0xf]
  %v43 = vld [vmem:[%s0 + $0x70] sm:$0xf]
  %v44 = vld [vmem:[%s0 + $0x74] sm:$0xf]
  %v45 = vld [vmem:[%s0 + $0x78] sm:$0xf]
  %v46 = vld [vmem:[%s0 + $0x7c] sm:$0xf]
  %v47 = vld [vmem:[%s0 + $0x80] sm:$0xf]
  %v48 = vld [vmem:[%s0 + $0x84] sm:$0xf]
  %v49 = vld [vmem:[%s0 + $0x88] sm:$0xf]
  %v50 = vld [vmem:[%s0 + $0x8c] sm:$0xf]
  %v51 = vld [vmem:[%s1] sm:$0xf]
  %v52 = vld [vmem:[%s1 + $0x4] sm:$0xf]
  %v53 = vld [vmem:[%s1 + $0x8] sm:$0xf]
  %v54 = vld [vmem:[%s1 + $0xc] sm:$0xf]
  %v55 = vld [vmem:[%s1 + $0x10] sm:$0xf]
  %v56 = vld [vmem:[%s1 + $0x14] sm:$0xf]
  %v57 = vld [vmem:[%s1 + $0x18] sm:$0xf]
  %v58 = vld [vmem:[%s1 + $0x1c] sm:$0xf]
  %v59 = vld [vmem:[%s1 + $0x20] sm:$0xf]
  %v60 = vld [vmem:[%s1 + $0x24] sm:$0xf]
  %v61 = vld [vmem:[%s1 + $0x28] sm:$0xf]
  %v62 = vld [vmem:[%s1 + $0x2c] sm:$0xf]
  %v63 = vld [vmem:[%s1 + $0x30] sm:$0xf]
  %v64 = vld [vmem:[%s1 + $0x34] sm:$0xf]
  %v65 = vld [vmem:[%s1 + $0x38] sm:$0xf]
  %v66 = vld [vmem:[%s1 + $0x3c] sm:$0xf]
  %v67 = vld [vmem:[%s2] sm:$0x1]
  %v69 = vlaneseq
  %v70 = vshrl.u32 %v69, 7
  %v71 = vsub.s32 0, %v70
  %v72 = vrot.slane %v67, %v71
  %v110 = vunpack.c.l.b16 %v15
  %v111 = vunpack.c.l.b16 %v16
  %v112 = vunpack.c.l.b16 %v17
  %v113 = vunpack.c.l.b16 %v18
  %v114 = vunpack.c.l.b16 %v19
  %v115 = vunpack.c.l.b16 %v20
  %v116 = vunpack.c.l.b16 %v21
  %v117 = vunpack.c.l.b16 %v22
  %v118 = vunpack.c.l.b16 %v23
  %v119 = vunpack.c.l.b16 %v24
  %v120 = vunpack.c.l.b16 %v25
  %v121 = vunpack.c.l.b16 %v26
  %v122 = vunpack.c.l.b16 %v27
  %v123 = vunpack.c.l.b16 %v28
  %v124 = vunpack.c.l.b16 %v29
  %v125 = vunpack.c.l.b16 %v30
  %v126 = vunpack.c.l.b16 %v31
  %v127 = vunpack.c.l.b16 %v32
  %v128 = vunpack.c.l.b16 %v33
  %v129 = vunpack.c.l.b16 %v34
  %v130 = vunpack.c.l.b16 %v35
  %v131 = vunpack.c.l.b16 %v36
  %v132 = vunpack.c.l.b16 %v37
  %v133 = vunpack.c.l.b16 %v38
  %v134 = vunpack.c.l.b16 %v39
  %v135 = vunpack.c.l.b16 %v40
  %v136 = vunpack.c.l.b16 %v41
  %v137 = vunpack.c.l.b16 %v42
  %v138 = vunpack.c.l.b16 %v43
  %v139 = vunpack.c.l.b16 %v44
  %v140 = vunpack.c.l.b16 %v45
  %v141 = vunpack.c.l.b16 %v46
  %v142 = vunpack.c.l.b16 %v47
  %v143 = vunpack.c.l.b16 %v48
  %v144 = vunpack.c.l.b16 %v49
  %v145 = vunpack.c.l.b16 %v50
  %v146 = vpack.c.b16 %v111, %v110
  %v147 = vpack.c.b16 %v113, %v112
  %v148 = vpack.c.b16 %v115, %v114
  %v149 = vpack.c.b16 %v117, %v116
  %v150 = vpack.c.b16 %v119, %v118
  %v151 = vpack.c.b16 %v121, %v120
  %v152 = vpack.c.b16 %v123, %v122
  %v153 = vpack.c.b16 %v125, %v124
  %v154 = vpack.c.b16 %v127, %v126
  %v155 = vpack.c.b16 %v129, %v128
  %v156 = vpack.c.b16 %v131, %v130
  %v157 = vpack.c.b16 %v133, %v132
  %v158 = vpack.c.b16 %v135, %v134
  %v159 = vpack.c.b16 %v137, %v136
  %v160 = vpack.c.b16 %v139, %v138
  %v161 = vpack.c.b16 %v141, %v140
  %v162 = vpack.c.b16 %v143, %v142
  %v163 = vpack.c.b16 %v145, %v144
  %v198 = vunpack.c.l.b16 %v51
  %v199 = vunpack.c.l.b16 %v52
  %v200 = vunpack.c.l.b16 %v53
  %v201 = vunpack.c.l.b16 %v54
  %v202 = vunpack.c.l.b16 %v55
  %v203 = vunpack.c.l.b16 %v56
  %v204 = vunpack.c.l.b16 %v57
  %v205 = vunpack.c.l.b16 %v58
  %v206 = vunpack.c.l.b16 %v59
  %v207 = vunpack.c.l.b16 %v60
  %v208 = vunpack.c.l.b16 %v61
  %v209 = vunpack.c.l.b16 %v62
  %v210 = vunpack.c.l.b16 %v63
  %v211 = vunpack.c.l.b16 %v64
  %v212 = vunpack.c.l.b16 %v65
  %v213 = vunpack.c.l.b16 %v66
  %v214 = vpack.c.b16 %v199, %v198
  %v215 = vpack.c.b16 %v201, %v200
  %v216 = vpack.c.b16 %v203, %v202
  %v217 = vpack.c.b16 %v205, %v204
  %v218 = vpack.c.b16 %v207, %v206
  %v219 = vpack.c.b16 %v209, %v208
  %v220 = vpack.c.b16 %v211, %v210
  %v221 = vpack.c.b16 %v213, %v212
  %230 = vmatprep.subr.bf16.mxu0 0
  %231 = vmatpush1.bf16.msra.mxu0 %v214
  %232 = vmatprep.subr.bf16.mxu0 0
  %233 = vmatpush1.bf16.msra.mxu0 %v215
  %234 = vmatprep.subr.bf16.mxu0 0
  %235 = vmatpush1.bf16.msra.mxu0 %v216
  %236 = vmatprep.subr.bf16.mxu0 0
  %237 = vmatpush1.bf16.msra.mxu0 %v217
  %238 = vmatprep.subr.bf16.mxu0 0
  %239 = vmatpush1.bf16.msra.mxu0 %v218
  %240 = vmatprep.subr.bf16.mxu0 0
  %241 = vmatpush1.bf16.msra.mxu0 %v219
  %242 = vmatprep.subr.bf16.mxu0 0
  %243 = vmatpush1.bf16.msra.mxu0 %v220
  %244 = vmatprep.subr.bf16.mxu0 0
  %245 = vmatpush1.bf16.msra.mxu0 %v221
  %246 = vmatprep.subr.bf16.mxu0 0
  %247 = vmatpush1.bf16.msra.mxu0 0
  %248 = vmatprep.subr.bf16.mxu0 0
  %249 = vmatpush1.bf16.msra.mxu0 0
  %250 = vmatprep.subr.bf16.mxu0 0
  %251 = vmatpush1.bf16.msra.mxu0 0
  %252 = vmatprep.subr.bf16.mxu0 0
  %253 = vmatpush1.bf16.msra.mxu0 0
  %254 = vmatprep.subr.bf16.mxu0 0
  %255 = vmatpush1.bf16.msra.mxu0 0
  %256 = vmatprep.subr.bf16.mxu0 0
  %257 = vmatpush1.bf16.msra.mxu0 0
  %258 = vmatprep.subr.bf16.mxu0 0
  %259 = vmatpush1.bf16.msra.mxu0 0
  %260 = vmatprep.subr.bf16.mxu0 0
  %261 = vmatpush1.bf16.msra.mxu0 0
  %262 = vmatprep.mubr.bf16.mxu0 0
  %263 = vmatmul.mubr.bf16.gmra.mrb[0].mxu0 %v146
  %v264 = vpop.f32.mrb[0].mxu0
  %v265 = vadd.f32 %v72, %v264
  %v266 = vpop.f32.mrb[0].mxu0
  %v267 = vpop.f32.mrb[0].mxu0
  %v268 = vadd.f32 %v72, %v267
  %v269 = vpop.f32.mrb[0].mxu0
  %270 = vmatprep.mubr.bf16.mxu0 0
  %271 = vmatmul.mubr.bf16.gmra.mrb[0].mxu0 %v147
  %v272 = vpop.f32.mrb[0].mxu0
  %v273 = vadd.f32 %v72, %v272
  %v274 = vpop.f32.mrb[0].mxu0
  %v275 = vpop.f32.mrb[0].mxu0
  %v276 = vadd.f32 %v72, %v275
  %v277 = vpop.f32.mrb[0].mxu0
  %278 = vmatprep.mubr.bf16.mxu0 0
  %279 = vmatmul.mubr.bf16.gmra.mrb[0].mxu0 %v148
  %v280 = vpop.f32.mrb[0].mxu0
  %v281 = vadd.f32 %v72, %v280
  %v282 = vpop.f32.mrb[0].mxu0
  %v283 = vpop.f32.mrb[0].mxu0
  %v284 = vadd.f32 %v72, %v283
  %v285 = vpop.f32.mrb[0].mxu0
  %286 = vmatprep.mubr.bf16.mxu0 0
  %287 = vmatmul.mubr.bf16.gmra.mrb[0].mxu0 %v149
  %v288 = vpop.f32.mrb[0].mxu0
  %v289 = vadd.f32 %v72, %v288
  %v290 = vpop.f32.mrb[0].mxu0
  %v291 = vpop.f32.mrb[0].mxu0
  %v292 = vadd.f32 %v72, %v291
  %v293 = vpop.f32.mrb[0].mxu0
  %294 = vmatprep.mubr.bf16.mxu0 0
  %295 = vmatmul.mubr.bf16.gmra.mrb[0].mxu0 %v150
  %v296 = vpop.f32.mrb[0].mxu0
  %v297 = vadd.f32 %v72, %v296
  %v298 = vpop.f32.mrb[0].mxu0
  %v299 = vpop.f32.mrb[0].mxu0
  %v300 = vadd.f32 %v72, %v299
  %v301 = vpop.f32.mrb[0].mxu0
  %302 = vmatprep.mubr.bf16.mxu0 0
  %303 = vmatmul.mubr.bf16.gmra.mrb[0].mxu0 %v151
  %v304 = vpop.f32.mrb[0].mxu0
  %v305 = vadd.f32 %v72, %v304
  %v306 = vpop.f32.mrb[0].mxu0
  %v307 = vpop.f32.mrb[0].mxu0
  %v308 = vadd.f32 %v72, %v307
  %v309 = vpop.f32.mrb[0].mxu0
  %310 = vmatprep.mubr.bf16.mxu0 0
  %311 = vmatmul.mubr.bf16.gmra.mrb[0].mxu0 %v152
  %v312 = vpop.f32.mrb[0].mxu0
  %v313 = vadd.f32 %v72, %v312
  %v314 = vpop.f32.mrb[0].mxu0
  %v315 = vpop.f32.mrb[0].mxu0
  %v316 = vadd.f32 %v72, %v315
  %v317 = vpop.f32.mrb[0].mxu0
  %318 = vmatprep.mubr.bf16.mxu0 0
  %319 = vmatmul.mubr.bf16.gmra.mrb[0].mxu0 %v153
  %v320 = vpop.f32.mrb[0].mxu0
  %v321 = vadd.f32 %v72, %v320
  %v322 = vpop.f32.mrb[0].mxu0
  %v323 = vpop.f32.mrb[0].mxu0
  %v324 = vadd.f32 %v72, %v323
  %v325 = vpop.f32.mrb[0].mxu0
  %326 = vmatprep.mubr.bf16.mxu0 0
  %327 = vmatmul.mubr.bf16.gmra.mrb[0].mxu0 %v154
  %v328 = vpop.f32.mrb[0].mxu0
  %v329 = vadd.f32 %v72, %v328
  %v330 = vpop.f32.mrb[0].mxu0
  %v331 = vpop.f32.mrb[0].mxu0
  %v332 = vadd.f32 %v72, %v331
  %v333 = vpop.f32.mrb[0].mxu0
  %334 = vmatprep.mubr.bf16.mxu0 0
  %335 = vmatmul.mubr.bf16.gmra.mrb[0].mxu0 %v155
  %v336 = vpop.f32.mrb[0].mxu0
  %v337 = vadd.f32 %v72, %v336
  %v338 = vpop.f32.mrb[0].mxu0
  %v339 = vpop.f32.mrb[0].mxu0
  %v340 = vadd.f32 %v72, %v339
  %v341 = vpop.f32.mrb[0].mxu0
  %342 = vmatprep.mubr.bf16.mxu0 0
  %343 = vmatmul.mubr.bf16.gmra.mrb[0].mxu0 %v156
  %v344 = vpop.f32.mrb[0].mxu0
  %v345 = vadd.f32 %v72, %v344
  %v346 = vpop.f32.mrb[0].mxu0
  %v347 = vpop.f32.mrb[0].mxu0
  %v348 = vadd.f32 %v72, %v347
  %v349 = vpop.f32.mrb[0].mxu0
  %350 = vmatprep.mubr.bf16.mxu0 0
  %351 = vmatmul.mubr.bf16.gmra.mrb[0].mxu0 %v157
  %v352 = vpop.f32.mrb[0].mxu0
  %v353 = vadd.f32 %v72, %v352
  %v354 = vpop.f32.mrb[0].mxu0
  %v355 = vpop.f32.mrb[0].mxu0
  %v356 = vadd.f32 %v72, %v355
  %v357 = vpop.f32.mrb[0].mxu0
  %358 = vmatprep.mubr.bf16.mxu0 0
  %359 = vmatmul.mubr.bf16.gmra.mrb[0].mxu0 %v158
  %v360 = vpop.f32.mrb[0].mxu0
  %v361 = vadd.f32 %v72, %v360
  %v362 = vpop.f32.mrb[0].mxu0
  %v363 = vpop.f32.mrb[0].mxu0
  %v364 = vadd.f32 %v72, %v363
  %v365 = vpop.f32.mrb[0].mxu0
  %366 = vmatprep.mubr.bf16.mxu0 0
  %367 = vmatmul.mubr.bf16.gmra.mrb[0].mxu0 %v159
  %v368 = vpop.f32.mrb[0].mxu0
  %v369 = vadd.f32 %v72, %v368
  %v370 = vpop.f32.mrb[0].mxu0
  %v371 = vpop.f32.mrb[0].mxu0
  %v372 = vadd.f32 %v72, %v371
  %v373 = vpop.f32.mrb[0].mxu0
  %374 = vmatprep.mubr.bf16.mxu0 0
  %375 = vmatmul.mubr.bf16.gmra.mrb[0].mxu0 %v160
  %v376 = vpop.f32.mrb[0].mxu0
  %v377 = vadd.f32 %v72, %v376
  %v378 = vpop.f32.mrb[0].mxu0
  %v379 = vpop.f32.mrb[0].mxu0
  %v380 = vadd.f32 %v72, %v379
  %v381 = vpop.f32.mrb[0].mxu0
  %382 = vmatprep.mubr.bf16.mxu0 0
  %383 = vmatmul.mubr.bf16.gmra.mrb[0].mxu0 %v161
  %v384 = vpop.f32.mrb[0].mxu0
  %v385 = vadd.f32 %v72, %v384
  %v386 = vpop.f32.mrb[0].mxu0
  %v387 = vpop.f32.mrb[0].mxu0
  %v388 = vadd.f32 %v72, %v387
  %v389 = vpop.f32.mrb[0].mxu0
  %390 = vmatprep.mubr.bf16.mxu0 0
  %391 = vmatmul.mubr.bf16.gmra.mrb[0].mxu0 %v162
  %v392 = vpop.f32.mrb[0].mxu0
  %v393 = vadd.f32 %v72, %v392
  %v394 = vpop.f32.mrb[0].mxu0
  %v395 = vpop.f32.mrb[0].mxu0
  %v396 = vadd.f32 %v72, %v395
  %v397 = vpop.f32.mrb[0].mxu0
  %398 = vmatprep.mubr.bf16.mxu0 0
  %399 = vmatmul.mubr.bf16.gmra.mrb[0].mxu0 %v163
  %v400 = vpop.f32.mrb[0].mxu0
  %v401 = vadd.f32 %v72, %v400
  %v402 = vpop.f32.mrb[0].mxu0
  %v403 = vpop.f32.mrb[0].mxu0
  %v404 = vadd.f32 %v72, %v403
  %v405 = vpop.f32.mrb[0].mxu0
  %406 = vdwg.mxu0
  %vm407 = vcmp.ge.f32.partialorder %v265, 0.0
  %vm408 = vcmp.ge.f32.partialorder %v268, 0.0
  %vm409 = vcmp.ge.f32.partialorder %v273, 0.0
  %vm410 = vcmp.ge.f32.partialorder %v276, 0.0
  %vm411 = vcmp.ge.f32.partialorder %v281, 0.0
  %vm412 = vcmp.ge.f32.partialorder %v284, 0.0
  %vm413 = vcmp.ge.f32.partialorder %v289, 0.0
  %vm414 = vcmp.ge.f32.partialorder %v292, 0.0
  %vm415 = vcmp.ge.f32.partialorder %v297, 0.0
  %vm416 = vcmp.ge.f32.partialorder %v300, 0.0
  %vm417 = vcmp.ge.f32.partialorder %v305, 0.0
  %vm418 = vcmp.ge.f32.partialorder %v308, 0.0
  %vm419 = vcmp.ge.f32.partialorder %v313, 0.0
  %vm420 = vcmp.ge.f32.partialorder %v316, 0.0
  %vm421 = vcmp.ge.f32.partialorder %v321, 0.0
  %vm422 = vcmp.ge.f32.partialorder %v324, 0.0
  %vm423 = vcmp.ge.f32.partialorder %v329, 0.0
  %vm424 = vcmp.ge.f32.partialorder %v332, 0.0
  %vm425 = vcmp.ge.f32.partialorder %v337, 0.0
  %vm426 = vcmp.ge.f32.partialorder %v340, 0.0
  %vm427 = vcmp.ge.f32.partialorder %v345, 0.0
  %vm428 = vcmp.ge.f32.partialorder %v348, 0.0
  %vm429 = vcmp.ge.f32.partialorder %v353, 0.0
  %vm430 = vcmp.ge.f32.partialorder %v356, 0.0
  %vm431 = vcmp.ge.f32.partialorder %v361, 0.0
  %vm432 = vcmp.ge.f32.partialorder %v364, 0.0
  %vm433 = vcmp.ge.f32.partialorder %v369, 0.0
  %vm434 = vcmp.ge.f32.partialorder %v372, 0.0
  %vm435 = vcmp.ge.f32.partialorder %v377, 0.0
  %vm436 = vcmp.ge.f32.partialorder %v380, 0.0
  %vm437 = vcmp.ge.f32.partialorder %v385, 0.0
  %vm438 = vcmp.ge.f32.partialorder %v388, 0.0
  %vm439 = vcmp.ge.f32.partialorder %v393, 0.0
  %vm440 = vcmp.ge.f32.partialorder %v396, 0.0
  %vm441 = vcmp.ge.f32.partialorder %v401, 0.0
  %vm442 = vcmp.ge.f32.partialorder %v404, 0.0
  %v443 = vmul.f32 %v265, 0.2
  %v444 = vmul.f32 %v268, 0.2
  %v445 = vmul.f32 %v273, 0.2
  %v446 = vmul.f32 %v276, 0.2
  %v447 = vmul.f32 %v281, 0.2
  %v448 = vmul.f32 %v284, 0.2
  %v449 = vmul.f32 %v289, 0.2
  %v450 = vmul.f32 %v292, 0.2
  %v451 = vmul.f32 %v297, 0.2
  %v452 = vmul.f32 %v300, 0.2
  %v453 = vmul.f32 %v305, 0.2
  %v454 = vmul.f32 %v308, 0.2
  %v455 = vmul.f32 %v313, 0.2
  %v456 = vmul.f32 %v316, 0.2
  %v457 = vmul.f32 %v321, 0.2
  %v458 = vmul.f32 %v324, 0.2
  %v459 = vmul.f32 %v329, 0.2
  %v460 = vmul.f32 %v332, 0.2
  %v461 = vmul.f32 %v337, 0.2
  %v462 = vmul.f32 %v340, 0.2
  %v463 = vmul.f32 %v345, 0.2
  %v464 = vmul.f32 %v348, 0.2
  %v465 = vmul.f32 %v353, 0.2
  %v466 = vmul.f32 %v356, 0.2
  %v467 = vmul.f32 %v361, 0.2
  %v468 = vmul.f32 %v364, 0.2
  %v469 = vmul.f32 %v369, 0.2
  %v470 = vmul.f32 %v372, 0.2
  %v471 = vmul.f32 %v377, 0.2
  %v472 = vmul.f32 %v380, 0.2
  %v473 = vmul.f32 %v385, 0.2
  %v474 = vmul.f32 %v388, 0.2
  %v475 = vmul.f32 %v393, 0.2
  %v476 = vmul.f32 %v396, 0.2
  %v477 = vmul.f32 %v401, 0.2
  %v478 = vmul.f32 %v404, 0.2
  %v479 = vsel %vm407, %v265, %v443
  %v480 = vsel %vm408, %v268, %v444
  %v481 = vsel %vm409, %v273, %v445
  %v482 = vsel %vm410, %v276, %v446
  %v483 = vsel %vm411, %v281, %v447
  %v484 = vsel %vm412, %v284, %v448
  %v485 = vsel %vm413, %v289, %v449
  %v486 = vsel %vm414, %v292, %v450
  %v487 = vsel %vm415, %v297, %v451
  %v488 = vsel %vm416, %v300, %v452
  %v489 = vsel %vm417, %v305, %v453
  %v490 = vsel %vm418, %v308, %v454
  %v491 = vsel %vm419, %v313, %v455
  %v492 = vsel %vm420, %v316, %v456
  %v493 = vsel %vm421, %v321, %v457
  %v494 = vsel %vm422, %v324, %v458
  %v495 = vsel %vm423, %v329, %v459
  %v496 = vsel %vm424, %v332, %v460
  %v497 = vsel %vm425, %v337, %v461
  %v498 = vsel %vm426, %v340, %v462
  %v499 = vsel %vm427, %v345, %v463
  %v500 = vsel %vm428, %v348, %v464
  %v501 = vsel %vm429, %v353, %v465
  %v502 = vsel %vm430, %v356, %v466
  %v503 = vsel %vm431, %v361, %v467
  %v504 = vsel %vm432, %v364, %v468
  %v505 = vsel %vm433, %v369, %v469
  %v506 = vsel %vm434, %v372, %v470
  %v507 = vsel %vm435, %v377, %v471
  %v508 = vsel %vm436, %v380, %v472
  %v509 = vsel %vm437, %v385, %v473
  %v510 = vsel %vm438, %v388, %v474
  %v511 = vsel %vm439, %v393, %v475
  %v512 = vsel %vm440, %v396, %v476
  %v513 = vsel %vm441, %v401, %v477
  %v514 = vsel %vm442, %v404, %v478
  %v515 = vpack.c.bf16 %v480, %v479
  %v516 = vpack.c.bf16 %v482, %v481
  %v517 = vpack.c.bf16 %v484, %v483
  %v518 = vpack.c.bf16 %v486, %v485
  %v519 = vpack.c.bf16 %v488, %v487
  %v520 = vpack.c.bf16 %v490, %v489
  %v521 = vpack.c.bf16 %v492, %v491
  %v522 = vpack.c.bf16 %v494, %v493
  %v523 = vpack.c.bf16 %v496, %v495
  %v524 = vpack.c.bf16 %v498, %v497
  %v525 = vpack.c.bf16 %v500, %v499
  %v526 = vpack.c.bf16 %v502, %v501
  %v527 = vpack.c.bf16 %v504, %v503
  %v528 = vpack.c.bf16 %v506, %v505
  %v529 = vpack.c.bf16 %v508, %v507
  %v530 = vpack.c.bf16 %v510, %v509
  %v531 = vpack.c.bf16 %v512, %v511
  %v532 = vpack.c.bf16 %v514, %v513
  %v551 = vunpack.c.l.b16 %v515
  %v552 = vunpack.c.h.b16 %v515
  %v553 = vunpack.c.l.b16 %v516
  %v554 = vunpack.c.h.b16 %v516
  %v555 = vunpack.c.l.b16 %v517
  %v556 = vunpack.c.h.b16 %v517
  %v557 = vunpack.c.l.b16 %v518
  %v558 = vunpack.c.h.b16 %v518
  %v559 = vunpack.c.l.b16 %v519
  %v560 = vunpack.c.h.b16 %v519
  %v561 = vunpack.c.l.b16 %v520
  %v562 = vunpack.c.h.b16 %v520
  %v563 = vunpack.c.l.b16 %v521
  %v564 = vunpack.c.h.b16 %v521
  %v565 = vunpack.c.l.b16 %v522
  %v566 = vunpack.c.h.b16 %v522
  %v567 = vunpack.c.l.b16 %v523
  %v568 = vunpack.c.h.b16 %v523
  %v569 = vunpack.c.l.b16 %v524
  %v570 = vunpack.c.h.b16 %v524
  %v571 = vunpack.c.l.b16 %v525
  %v572 = vunpack.c.h.b16 %v525
  %v573 = vunpack.c.l.b16 %v526
  %v574 = vunpack.c.h.b16 %v526
  %v575 = vunpack.c.l.b16 %v527
  %v576 = vunpack.c.h.b16 %v527
  %v577 = vunpack.c.l.b16 %v528
  %v578 = vunpack.c.h.b16 %v528
  %v579 = vunpack.c.l.b16 %v529
  %v580 = vunpack.c.h.b16 %v529
  %v581 = vunpack.c.l.b16 %v530
  %v582 = vunpack.c.h.b16 %v530
  %v583 = vunpack.c.l.b16 %v531
  %v584 = vunpack.c.h.b16 %v531
  %v585 = vunpack.c.l.b16 %v532
  %v586 = vunpack.c.h.b16 %v532
  %v587 = vpack.c.b16 %v551, %v551
  %v588 = vpack.c.b16 %v552, %v552
  %v589 = vpack.c.b16 %v553, %v553
  %v590 = vpack.c.b16 %v554, %v554
  %v591 = vpack.c.b16 %v555, %v555
  %v592 = vpack.c.b16 %v556, %v556
  %v593 = vpack.c.b16 %v557, %v557
  %v594 = vpack.c.b16 %v558, %v558
  %v595 = vpack.c.b16 %v559, %v559
  %v596 = vpack.c.b16 %v560, %v560
  %v597 = vpack.c.b16 %v561, %v561
  %v598 = vpack.c.b16 %v562, %v562
  %v599 = vpack.c.b16 %v563, %v563
  %v600 = vpack.c.b16 %v564, %v564
  %v601 = vpack.c.b16 %v565, %v565
  %v602 = vpack.c.b16 %v566, %v566
  %v603 = vpack.c.b16 %v567, %v567
  %v604 = vpack.c.b16 %v568, %v568
  %v605 = vpack.c.b16 %v569, %v569
  %v606 = vpack.c.b16 %v570, %v570
  %v607 = vpack.c.b16 %v571, %v571
  %v608 = vpack.c.b16 %v572, %v572
  %v609 = vpack.c.b16 %v573, %v573
  %v610 = vpack.c.b16 %v574, %v574
  %v611 = vpack.c.b16 %v575, %v575
  %v612 = vpack.c.b16 %v576, %v576
  %v613 = vpack.c.b16 %v577, %v577
  %v614 = vpack.c.b16 %v578, %v578
  %v615 = vpack.c.b16 %v579, %v579
  %v616 = vpack.c.b16 %v580, %v580
  %v617 = vpack.c.b16 %v581, %v581
  %v618 = vpack.c.b16 %v582, %v582
  %v619 = vpack.c.b16 %v583, %v583
  %v620 = vpack.c.b16 %v584, %v584
  %v621 = vpack.c.b16 %v585, %v585
  %v622 = vpack.c.b16 %v586, %v586
  %659 = vst [vmem:[%s3] sm:$0xf] %v587
  %660 = vst [vmem:[%s3 + $0x4] sm:$0xf] %v588
  %661 = vst [vmem:[%s3 + $0x8] sm:$0xf] %v589
  %662 = vst [vmem:[%s3 + $0xc] sm:$0xf] %v590
  %663 = vst [vmem:[%s3 + $0x10] sm:$0xf] %v591
  %664 = vst [vmem:[%s3 + $0x14] sm:$0xf] %v592
  %665 = vst [vmem:[%s3 + $0x18] sm:$0xf] %v593
  %666 = vst [vmem:[%s3 + $0x1c] sm:$0xf] %v594
  %667 = vst [vmem:[%s3 + $0x20] sm:$0xf] %v595
  %668 = vst [vmem:[%s3 + $0x24] sm:$0xf] %v596
  %669 = vst [vmem:[%s3 + $0x28] sm:$0xf] %v597
  %670 = vst [vmem:[%s3 + $0x2c] sm:$0xf] %v598
  %671 = vst [vmem:[%s3 + $0x30] sm:$0xf] %v599
  %672 = vst [vmem:[%s3 + $0x34] sm:$0xf] %v600
  %673 = vst [vmem:[%s3 + $0x38] sm:$0xf] %v601
  %674 = vst [vmem:[%s3 + $0x3c] sm:$0xf] %v602
  %675 = vst [vmem:[%s3 + $0x40] sm:$0xf] %v603
  %676 = vst [vmem:[%s3 + $0x44] sm:$0xf] %v604
  %677 = vst [vmem:[%s3 + $0x48] sm:$0xf] %v605
  %678 = vst [vmem:[%s3 + $0x4c] sm:$0xf] %v606
  %679 = vst [vmem:[%s3 + $0x50] sm:$0xf] %v607
  %680 = vst [vmem:[%s3 + $0x54] sm:$0xf] %v608
  %681 = vst [vmem:[%s3 + $0x58] sm:$0xf] %v609
  %682 = vst [vmem:[%s3 + $0x5c] sm:$0xf] %v610
  %683 = vst [vmem:[%s3 + $0x60] sm:$0xf] %v611
  %684 = vst [vmem:[%s3 + $0x64] sm:$0xf] %v612
  %685 = vst [vmem:[%s3 + $0x68] sm:$0xf] %v613
  %686 = vst [vmem:[%s3 + $0x6c] sm:$0xf] %v614
  %687 = vst [vmem:[%s3 + $0x70] sm:$0xf] %v615
  %688 = vst [vmem:[%s3 + $0x74] sm:$0xf] %v616
  %689 = vst [vmem:[%s3 + $0x78] sm:$0xf] %v617
  %690 = vst [vmem:[%s3 + $0x7c] sm:$0xf] %v618
  %691 = vst [vmem:[%s3 + $0x80] sm:$0xf] %v619
  %692 = vst [vmem:[%s3 + $0x84] sm:$0xf] %v620
  %693 = vst [vmem:[%s3 + $0x88] sm:$0xf] %v621
  %694 = vst [vmem:[%s3 + $0x8c] sm:$0xf] %v622
  // Predicated region
  $region14: #{conv_discriminator_forward.3} parent=0 // pred_check
    _
  $region15: #{conv_discriminator_forward.3} parent=0 // pred_check_branch
    %696 = sbr.rel (0) target = $region17
  $region16: #{conv_discriminator_forward.3} parent=0 // pred_region
    _
  $region17: #{conv_discriminator_forward.3} parent=0 // pred_fallthru
    _
  // Predicated region
  $region18: #{conv_discriminator_forward.3} parent=0 // pred_check
    _
  $region19: #{conv_discriminator_forward.3} parent=0 // pred_check_branch
    %698 = sbr.rel (0) target = $region21
  $region20: #{conv_discriminator_forward.3} parent=0 // pred_region
    _
  $region21: #{conv_discriminator_forward.3} parent=0 // pred_fallthru
    _

// kernel: conv_discriminator_forward.4
$region0: #{conv_discriminator_forward.4}
  #allocation0 [shape = 'u32[]', space=smem, size = 0x4, offset = 0x4, fixed_abs, tag = 'smem constant byte address 0x4 - core index']
  #allocation1 [shape = 'u32[144,128]{1,0:T(1,128)}', space=vmem, size = 0x12000, scoped, tag = 'internal scratch']
  %s0 = inlined_call_operand.vmem [shape: bf16[72,128], index: 0, kind: input, shape index: {}]
  %s1 = inlined_call_operand.vmem [shape: bf16[128,128], index: 1, kind: input, shape index: {}]
  %s2 = inlined_call_operand.vmem [shape: f32[1,128], index: 2, kind: input, shape index: {}]
  %s3 = inlined_call_operand.vmem [shape: bf16[72,128], index: 3, kind: output, shape index: {}]
  %s4 = sld [smem:[#allocation0]]
  $region22: #{conv_discriminator_forward.4} parent=0
    _
  %s6 = ssub.s32 1, %s4
  %s7 = scalar_select 0, %s6, %s4
  // Predicated region
  $region2: #{conv_discriminator_forward.4} parent=0 // pred_check
    _
  $region3: #{conv_discriminator_forward.4} parent=0 // pred_check_branch
    %9 = sbr.rel (0) target = $region5
  $region4: #{conv_discriminator_forward.4} parent=0 // pred_region
    _
  $region5: #{conv_discriminator_forward.4} parent=0 // pred_fallthru
    _
  // Predicated region
  $region6: #{conv_discriminator_forward.4} parent=0 // pred_check
    _
  $region7: #{conv_discriminator_forward.4} parent=0 // pred_check_branch
    %11 = sbr.rel (0) target = $region9
  $region8: #{conv_discriminator_forward.4} parent=0 // pred_region
    _
  $region9: #{conv_discriminator_forward.4} parent=0 // pred_fallthru
    _
  // Predicated region
  $region10: #{conv_discriminator_forward.4} parent=0 // pred_check
    _
  $region11: #{conv_discriminator_forward.4} parent=0 // pred_check_branch
    %13 = sbr.rel (0) target = $region13
  $region12: #{conv_discriminator_forward.4} parent=0 // pred_region
    _
  $region13: #{conv_discriminator_forward.4} parent=0 // pred_fallthru
    _
  %v15 = vld [vmem:[%s0] sm:$0xf]
  %v16 = vld [vmem:[%s0 + $0x4] sm:$0xf]
  %v17 = vld [vmem:[%s0 + $0x8] sm:$0xf]
  %v18 = vld [vmem:[%s0 + $0xc] sm:$0xf]
  %v19 = vld [vmem:[%s0 + $0x10] sm:$0xf]
  %v20 = vld [vmem:[%s0 + $0x14] sm:$0xf]
  %v21 = vld [vmem:[%s0 + $0x18] sm:$0xf]
  %v22 = vld [vmem:[%s0 + $0x1c] sm:$0xf]
  %v23 = vld [vmem:[%s0 + $0x20] sm:$0xf]
  %v24 = vld [vmem:[%s1] sm:$0xf]
  %v25 = vld [vmem:[%s1 + $0x4] sm:$0xf]
  %v26 = vld [vmem:[%s1 + $0x8] sm:$0xf]
  %v27 = vld [vmem:[%s1 + $0xc] sm:$0xf]
  %v28 = vld [vmem:[%s1 + $0x10] sm:$0xf]
  %v29 = vld [vmem:[%s1 + $0x14] sm:$0xf]
  %v30 = vld [vmem:[%s1 + $0x18] sm:$0xf]
  %v31 = vld [vmem:[%s1 + $0x1c] sm:$0xf]
  %v32 = vld [vmem:[%s1 + $0x20] sm:$0xf]
  %v33 = vld [vmem:[%s1 + $0x24] sm:$0xf]
  %v34 = vld [vmem:[%s1 + $0x28] sm:$0xf]
  %v35 = vld [vmem:[%s1 + $0x2c] sm:$0xf]
  %v36 = vld [vmem:[%s1 + $0x30] sm:$0xf]
  %v37 = vld [vmem:[%s1 + $0x34] sm:$0xf]
  %v38 = vld [vmem:[%s1 + $0x38] sm:$0xf]
  %v39 = vld [vmem:[%s1 + $0x3c] sm:$0xf]
  %v40 = vld [vmem:[%s2] sm:$0x1]
  %v42 = vlaneseq
  %v43 = vshrl.u32 %v42, 7
  %v44 = vsub.s32 0, %v43
  %v45 = vrot.slane %v40, %v44
  %v56 = vunpack.c.l.b16 %v15
  %v57 = vunpack.c.l.b16 %v16
  %v58 = vunpack.c.l.b16 %v17
  %v59 = vunpack.c.l.b16 %v18
  %v60 = vunpack.c.l.b16 %v19
  %v61 = vunpack.c.l.b16 %v20
  %v62 = vunpack.c.l.b16 %v21
  %v63 = vunpack.c.l.b16 %v22
  %v64 = vunpack.c.l.b16 %v23
  %v65 = vpack.c.b16 %v57, %v56
  %v66 = vpack.c.b16 %v59, %v58
  %v67 = vpack.c.b16 %v61, %v60
  %v68 = vpack.c.b16 %v63, %v62
  %v69 = vpack.c.b16 %v64, %v64
  %v91 = vunpack.c.l.b16 %v24
  %v92 = vunpack.c.l.b16 %v25
  %v93 = vunpack.c.l.b16 %v26
  %v94 = vunpack.c.l.b16 %v27
  %v95 = vunpack.c.l.b16 %v28
  %v96 = vunpack.c.l.b16 %v29
  %v97 = vunpack.c.l.b16 %v30
  %v98 = vunpack.c.l.b16 %v31
  %v99 = vunpack.c.l.b16 %v32
  %v100 = vunpack.c.l.b16 %v33
  %v101 = vunpack.c.l.b16 %v34
  %v102 = vunpack.c.l.b16 %v35
  %v103 = vunpack.c.l.b16 %v36
  %v104 = vunpack.c.l.b16 %v37
  %v105 = vunpack.c.l.b16 %v38
  %v106 = vunpack.c.l.b16 %v39
  %v107 = vpack.c.b16 %v92, %v91
  %v108 = vpack.c.b16 %v94, %v93
  %v109 = vpack.c.b16 %v96, %v95
  %v110 = vpack.c.b16 %v98, %v97
  %v111 = vpack.c.b16 %v100, %v99
  %v112 = vpack.c.b16 %v102, %v101
  %v113 = vpack.c.b16 %v104, %v103
  %v114 = vpack.c.b16 %v106, %v105
  %123 = vmatprep.subr.bf16.mxu0 0
  %124 = vmatpush1.bf16.msra.mxu0 %v107
  %125 = vmatprep.subr.bf16.mxu0 0
  %126 = vmatpush1.bf16.msra.mxu0 %v108
  %127 = vmatprep.subr.bf16.mxu0 0
  %128 = vmatpush1.bf16.msra.mxu0 %v109
  %129 = vmatprep.subr.bf16.mxu0 0
  %130 = vmatpush1.bf16.msra.mxu0 %v110
  %131 = vmatprep.subr.bf16.mxu0 0
  %132 = vmatpush1.bf16.msra.mxu0 %v111
  %133 = vmatprep.subr.bf16.mxu0 0
  %134 = vmatpush1.bf16.msra.mxu0 %v112
  %135 = vmatprep.subr.bf16.mxu0 0
  %136 = vmatpush1.bf16.msra.mxu0 %v113
  %137 = vmatprep.subr.bf16.mxu0 0
  %138 = vmatpush1.bf16.msra.mxu0 %v114
  %139 = vmatprep.subr.bf16.mxu0 0
  %140 = vmatpush1.bf16.msra.mxu0 0
  %141 = vmatprep.subr.bf16.mxu0 0
  %142 = vmatpush1.bf16.msra.mxu0 0
  %143 = vmatprep.subr.bf16.mxu0 0
  %144 = vmatpush1.bf16.msra.mxu0 0
  %145 = vmatprep.subr.bf16.mxu0 0
  %146 = vmatpush1.bf16.msra.mxu0 0
  %147 = vmatprep.subr.bf16.mxu0 0
  %148 = vmatpush1.bf16.msra.mxu0 0
  %149 = vmatprep.subr.bf16.mxu0 0
  %150 = vmatpush1.bf16.msra.mxu0 0
  %151 = vmatprep.subr.bf16.mxu0 0
  %152 = vmatpush1.bf16.msra.mxu0 0
  %153 = vmatprep.subr.bf16.mxu0 0
  %154 = vmatpush1.bf16.msra.mxu0 0
  %155 = vmatprep.mubr.bf16.mxu0 0
  %156 = vmatmul.mubr.bf16.gmra.mrb[0].mxu0 %v65
  %v157 = vpop.f32.mrb[0].mxu0
  %v158 = vadd.f32 %v45, %v157
  %v159 = vpop.f32.mrb[0].mxu0
  %v160 = vpop.f32.mrb[0].mxu0
  %v161 = vadd.f32 %v45, %v160
  %v162 = vpop.f32.mrb[0].mxu0
  %163 = vmatprep.mubr.bf16.mxu0 0
  %164 = vmatmul.mubr.bf16.gmra.mrb[0].mxu0 %v66
  %v165 = vpop.f32.mrb[0].mxu0
  %v166 = vadd.f32 %v45, %v165
  %v167 = vpop.f32.mrb[0].mxu0
  %v168 = vpop.f32.mrb[0].mxu0
  %v169 = vadd.f32 %v45, %v168
  %v170 = vpop.f32.mrb[0].mxu0
  %171 = vmatprep.mubr.bf16.mxu0 0
  %172 = vmatmul.mubr.bf16.gmra.mrb[0].mxu0 %v67
  %v173 = vpop.f32.mrb[0].mxu0
  %v174 = vadd.f32 %v45, %v173
  %v175 = vpop.f32.mrb[0].mxu0
  %v176 = vpop.f32.mrb[0].mxu0
  %v177 = vadd.f32 %v45, %v176
  %v178 = vpop.f32.mrb[0].mxu0
  %179 = vmatprep.mubr.bf16.mxu0 0
  %180 = vmatmul.mubr.bf16.gmra.mrb[0].mxu0 %v68
  %v181 = vpop.f32.mrb[0].mxu0
  %v182 = vadd.f32 %v45, %v181
  %v183 = vpop.f32.mrb[0].mxu0
  %v184 = vpop.f32.mrb[0].mxu0
  %v185 = vadd.f32 %v45, %v184
  %v186 = vpop.f32.mrb[0].mxu0
  %187 = vmatprep.mubr.bf16.mxu0 0
  %188 = vmatmul.mubr.bf16.gmra.mrb[0].mxu0 %v69
  %v189 = vpop.f32.mrb[0].mxu0
  %v190 = vadd.f32 %v45, %v189
  %v191 = vpop.f32.mrb[0].mxu0
  %v192 = vpop.f32.mrb[0].mxu0
  %v193 = vpop.f32.mrb[0].mxu0
  %194 = vdwg.mxu0
  %vm195 = vcmp.ge.f32.partialorder %v158, 0.0
  %vm196 = vcmp.ge.f32.partialorder %v161, 0.0
  %vm197 = vcmp.ge.f32.partialorder %v166, 0.0
  %vm198 = vcmp.ge.f32.partialorder %v169, 0.0
  %vm199 = vcmp.ge.f32.partialorder %v174, 0.0
  %vm200 = vcmp.ge.f32.partialorder %v177, 0.0
  %vm201 = vcmp.ge.f32.partialorder %v182, 0.0
  %vm202 = vcmp.ge.f32.partialorder %v185, 0.0
  %vm203 = vcmp.ge.f32.partialorder %v190, 0.0
  %v204 = vmul.f32 %v158, 0.2
  %v205 = vmul.f32 %v161, 0.2
  %v206 = vmul.f32 %v166, 0.2
  %v207 = vmul.f32 %v169, 0.2
  %v208 = vmul.f32 %v174, 0.2
  %v209 = vmul.f32 %v177, 0.2
  %v210 = vmul.f32 %v182, 0.2
  %v211 = vmul.f32 %v185, 0.2
  %v212 = vmul.f32 %v190, 0.2
  %v213 = vsel %vm195, %v158, %v204
  %v214 = vsel %vm196, %v161, %v205
  %v215 = vsel %vm197, %v166, %v206
  %v216 = vsel %vm198, %v169, %v207
  %v217 = vsel %vm199, %v174, %v208
  %v218 = vsel %vm200, %v177, %v209
  %v219 = vsel %vm201, %v182, %v210
  %v220 = vsel %vm202, %v185, %v211
  %v221 = vsel %vm203, %v190, %v212
  %v222 = vpack.c.bf16 %v214, %v213
  %v223 = vpack.c.bf16 %v216, %v215
  %v224 = vpack.c.bf16 %v218, %v217
  %v225 = vpack.c.bf16 %v220, %v219
  %v226 = vpack.c.bf16 %v221, %v221
  %v232 = vunpack.c.l.b16 %v222
  %v233 = vunpack.c.h.b16 %v222
  %v234 = vunpack.c.l.b16 %v223
  %v235 = vunpack.c.h.b16 %v223
  %v236 = vunpack.c.l.b16 %v224
  %v237 = vunpack.c.h.b16 %v224
  %v238 = vunpack.c.l.b16 %v225
  %v239 = vunpack.c.h.b16 %v225
  %v240 = vunpack.c.l.b16 %v226
  %v241 = vpack.c.b16 %v232, %v232
  %v242 = vpack.c.b16 %v233, %v233
  %v243 = vpack.c.b16 %v234, %v234
  %v244 = vpack.c.b16 %v235, %v235
  %v245 = vpack.c.b16 %v236, %v236
  %v246 = vpack.c.b16 %v237, %v237
  %v247 = vpack.c.b16 %v238, %v238
  %v248 = vpack.c.b16 %v239, %v239
  %v249 = vpack.c.b16 %v240, %v240
  %259 = vst [vmem:[%s3] sm:$0xf] %v241
  %260 = vst [vmem:[%s3 + $0x4] sm:$0xf] %v242
  %261 = vst [vmem:[%s3 + $0x8] sm:$0xf] %v243
  %262 = vst [vmem:[%s3 + $0xc] sm:$0xf] %v244
  %263 = vst [vmem:[%s3 + $0x10] sm:$0xf] %v245
  %264 = vst [vmem:[%s3 + $0x14] sm:$0xf] %v246
  %265 = vst [vmem:[%s3 + $0x18] sm:$0xf] %v247
  %266 = vst [vmem:[%s3 + $0x1c] sm:$0xf] %v248
  %267 = vst [vmem:[%s3 + $0x20] sm:$0xf] %v249
  // Predicated region
  $region14: #{conv_discriminator_forward.4} parent=0 // pred_check
    _
  $region15: #{conv_discriminator_forward.4} parent=0 // pred_check_branch
    %269 = sbr.rel (0) target = $region17
  $region16: #{conv_discriminator_forward.4} parent=0 // pred_region
    _
  $region17: #{conv_discriminator_forward.4} parent=0 // pred_fallthru
    _
  // Predicated region
  $region18: #{conv_discriminator_forward.4} parent=0 // pred_check
    _
  $region19: #{conv_discriminator_forward.4} parent=0 // pred_check_branch
    %271 = sbr.rel (0) target = $region21
  $region20: #{conv_discriminator_forward.4} parent=0 // pred_region
    _
  $region21: #{conv_discriminator_forward.4} parent=0 // pred_fallthru
    _

// kernel: conv_discriminator_forward.5
$region0: #{conv_discriminator_forward.5}
  #allocation0 [shape = 'u32[]', space=smem, size = 0x4, offset = 0x4, fixed_abs, tag = 'smem constant byte address 0x4 - core index']
  #allocation1 [shape = 'u32[144,128]{1,0:T(1,128)}', space=vmem, size = 0x12000, scoped, tag = 'internal scratch']
  %s0 = inlined_call_operand.vmem [shape: bf16[8,256], index: 0, kind: input, shape index: {}]
  %s1 = inlined_call_operand.vmem [shape: bf16[8,256], index: 1, kind: input, shape index: {}]
  %s2 = inlined_call_operand.vmem [shape: bf16[8,256], index: 2, kind: input, shape index: {}]
  %s3 = inlined_call_operand.vmem [shape: bf16[8,256], index: 3, kind: input, shape index: {}]
  %s4 = inlined_call_operand.vmem [shape: bf16[256,128], index: 4, kind: input, shape index: {}]
  %s5 = inlined_call_operand.vmem [shape: f32[1,128], index: 5, kind: input, shape index: {}]
  %s6 = inlined_call_operand.vmem [shape: bf16[4,128,128], index: 6, kind: input, shape index: {}]
  %s7 = inlined_call_operand.vmem [shape: f32[1,128], index: 7, kind: input, shape index: {}]
  %s8 = inlined_call_operand.vmem [shape: f32[8,128], index: 8, kind: output, shape index: {}]
  %s9 = sld [smem:[#allocation0]]
  $region42: #{conv_discriminator_forward.5} parent=0
    _
  %s11 = ssub.s32 1, %s9
  %s12 = scalar_select 0, %s11, %s9
  // Predicated region
  $region2: #{conv_discriminator_forward.5} parent=0 // pred_check
    _
  $region3: #{conv_discriminator_forward.5} parent=0 // pred_check_branch
    %14 = sbr.rel (0) target = $region5
  $region4: #{conv_discriminator_forward.5} parent=0 // pred_region
    _
  $region5: #{conv_discriminator_forward.5} parent=0 // pred_fallthru
    _
  // Predicated region
  $region6: #{conv_discriminator_forward.5} parent=0 // pred_check
    _
  $region7: #{conv_discriminator_forward.5} parent=0 // pred_check_branch
    %16 = sbr.rel (0) target = $region9
  $region8: #{conv_discriminator_forward.5} parent=0 // pred_region
    _
  $region9: #{conv_discriminator_forward.5} parent=0 // pred_fallthru
    _
  // Predicated region
  $region10: #{conv_discriminator_forward.5} parent=0 // pred_check
    _
  $region11: #{conv_discriminator_forward.5} parent=0 // pred_check_branch
    %18 = sbr.rel (0) target = $region13
  $region12: #{conv_discriminator_forward.5} parent=0 // pred_region
    _
  $region13: #{conv_discriminator_forward.5} parent=0 // pred_fallthru
    _
  // Predicated region
  $region14: #{conv_discriminator_forward.5} parent=0 // pred_check
    _
  $region15: #{conv_discriminator_forward.5} parent=0 // pred_check_branch
    %20 = sbr.rel (0) target = $region17
  $region16: #{conv_discriminator_forward.5} parent=0 // pred_region
    _
  $region17: #{conv_discriminator_forward.5} parent=0 // pred_fallthru
    _
  // Predicated region
  $region18: #{conv_discriminator_forward.5} parent=0 // pred_check
    _
  $region19: #{conv_discriminator_forward.5} parent=0 // pred_check_branch
    %22 = sbr.rel (0) target = $region21
  $region20: #{conv_discriminator_forward.5} parent=0 // pred_region
    _
  $region21: #{conv_discriminator_forward.5} parent=0 // pred_fallthru
    _
  // Predicated region
  $region22: #{conv_discriminator_forward.5} parent=0 // pred_check
    _
  $region23: #{conv_discriminator_forward.5} parent=0 // pred_check_branch
    %24 = sbr.rel (0) target = $region25
  $region24: #{conv_discriminator_forward.5} parent=0 // pred_region
    _
  $region25: #{conv_discriminator_forward.5} parent=0 // pred_fallthru
    _
  // Predicated region
  $region26: #{conv_discriminator_forward.5} parent=0 // pred_check
    _
  $region27: #{conv_discriminator_forward.5} parent=0 // pred_check_branch
    %26 = sbr.rel (0) target = $region29
  $region28: #{conv_discriminator_forward.5} parent=0 // pred_region
    _
  $region29: #{conv_discriminator_forward.5} parent=0 // pred_fallthru
    _
  // Predicated region
  $region30: #{conv_discriminator_forward.5} parent=0 // pred_check
    _
  $region31: #{conv_discriminator_forward.5} parent=0 // pred_check_branch
    %28 = sbr.rel (0) target = $region33
  $region32: #{conv_discriminator_forward.5} parent=0 // pred_region
    _
  $region33: #{conv_discriminator_forward.5} parent=0 // pred_fallthru
    _
  %v30 = vld [vmem:[%s7] sm:$0x1]
  %v32 = vlaneseq
  %v33 = vshrl.u32 %v32, 7
  %v34 = vsub.s32 0, %v33
  %v35 = vrot.slane %v30, %v34
  %v37 = vadd.f32 %v35, 0.0
  %v38 = vld [vmem:[%s0] sm:$0xff]
  %v39 = vld [vmem:[%s4] sm:$0xf]
  %v40 = vld [vmem:[%s4 + $0x4] sm:$0xf]
  %v41 = vld [vmem:[%s4 + $0x8] sm:$0xf]
  %v42 = vld [vmem:[%s4 + $0xc] sm:$0xf]
  %v43 = vld [vmem:[%s4 + $0x10] sm:$0xf]
  %v44 = vld [vmem:[%s4 + $0x14] sm:$0xf]
  %v45 = vld [vmem:[%s4 + $0x18] sm:$0xf]
  %v46 = vld [vmem:[%s4 + $0x1c] sm:$0xf]
  %v47 = vld [vmem:[%s4 + $0x20] sm:$0xf]
  %v48 = vld [vmem:[%s4 + $0x24] sm:$0xf]
  %v49 = vld [vmem:[%s4 + $0x28] sm:$0xf]
  %v50 = vld [vmem:[%s4 + $0x2c] sm:$0xf]
  %v51 = vld [vmem:[%s4 + $0x30] sm:$0xf]
  %v52 = vld [vmem:[%s4 + $0x34] sm:$0xf]
  %v53 = vld [vmem:[%s4 + $0x38] sm:$0xf]
  %v54 = vld [vmem:[%s4 + $0x3c] sm:$0xf]
  %v55 = vld [vmem:[%s4 + $0x40] sm:$0xf]
  %v56 = vld [vmem:[%s4 + $0x44] sm:$0xf]
  %v57 = vld [vmem:[%s4 + $0x48] sm:$0xf]
  %v58 = vld [vmem:[%s4 + $0x4c] sm:$0xf]
  %v59 = vld [vmem:[%s4 + $0x50] sm:$0xf]
  %v60 = vld [vmem:[%s4 + $0x54] sm:$0xf]
  %v61 = vld [vmem:[%s4 + $0x58] sm:$0xf]
  %v62 = vld [vmem:[%s4 + $0x5c] sm:$0xf]
  %v63 = vld [vmem:[%s4 + $0x60] sm:$0xf]
  %v64 = vld [vmem:[%s4 + $0x64] sm:$0xf]
  %v65 = vld [vmem:[%s4 + $0x68] sm:$0xf]
  %v66 = vld [vmem:[%s4 + $0x6c] sm:$0xf]
  %v67 = vld [vmem:[%s4 + $0x70] sm:$0xf]
  %v68 = vld [vmem:[%s4 + $0x74] sm:$0xf]
  %v69 = vld [vmem:[%s4 + $0x78] sm:$0xf]
  %v70 = vld [vmem:[%s4 + $0x7c] sm:$0xf]
  %v71 = vld [vmem:[%s5] sm:$0x1]
  %v73 = vlaneseq
  %v74 = vshrl.u32 %v73, 7
  %v75 = vsub.s32 0, %v74
  %v76 = vrot.slane %v71, %v75
  %v79 = vunpack.c.l.b16 %v38
  %v80 = vunpack.c.h.b16 %v38
  %v81 = vpack.c.b16 %v79, %v79
  %v82 = vpack.c.b16 %v80, %v80
  %v117 = vunpack.c.l.b16 %v39
  %v118 = vunpack.c.l.b16 %v40
  %v119 = vunpack.c.l.b16 %v41
  %v120 = vunpack.c.l.b16 %v42
  %v121 = vunpack.c.l.b16 %v43
  %v122 = vunpack.c.l.b16 %v44
  %v123 = vunpack.c.l.b16 %v45
  %v124 = vunpack.c.l.b16 %v46
  %v125 = vunpack.c.l.b16 %v47
  %v126 = vunpack.c.l.b16 %v48
  %v127 = vunpack.c.l.b16 %v49
  %v128 = vunpack.c.l.b16 %v50
  %v129 = vunpack.c.l.b16 %v51
  %v130 = vunpack.c.l.b16 %v52
  %v131 = vunpack.c.l.b16 %v53
  %v132 = vunpack.c.l.b16 %v54
  %v133 = vunpack.c.l.b16 %v55
  %v134 = vunpack.c.l.b16 %v56
  %v135 = vunpack.c.l.b16 %v57
  %v136 = vunpack.c.l.b16 %v58
  %v137 = vunpack.c.l.b16 %v59
  %v138 = vunpack.c.l.b16 %v60
  %v139 = vunpack.c.l.b16 %v61
  %v140 = vunpack.c.l.b16 %v62
  %v141 = vunpack.c.l.b16 %v63
  %v142 = vunpack.c.l.b16 %v64
  %v143 = vunpack.c.l.b16 %v65
  %v144 = vunpack.c.l.b16 %v66
  %v145 = vunpack.c.l.b16 %v67
  %v146 = vunpack.c.l.b16 %v68
  %v147 = vunpack.c.l.b16 %v69
  %v148 = vunpack.c.l.b16 %v70
  %v149 = vpack.c.b16 %v118, %v117
  %v150 = vpack.c.b16 %v120, %v119
  %v151 = vpack.c.b16 %v122, %v121
  %v152 = vpack.c.b16 %v124, %v123
  %v153 = vpack.c.b16 %v126, %v125
  %v154 = vpack.c.b16 %v128, %v127
  %v155 = vpack.c.b16 %v130, %v129
  %v156 = vpack.c.b16 %v132, %v131
  %v157 = vpack.c.b16 %v134, %v133
  %v158 = vpack.c.b16 %v136, %v135
  %v159 = vpack.c.b16 %v138, %v137
  %v160 = vpack.c.b16 %v140, %v139
  %v161 = vpack.c.b16 %v142, %v141
  %v162 = vpack.c.b16 %v144, %v143
  %v163 = vpack.c.b16 %v146, %v145
  %v164 = vpack.c.b16 %v148, %v147
  %181 = vmatprep.subr.bf16.mxu0 0
  %182 = vmatpush1.bf16.msra.mxu0 %v149
  %183 = vmatprep.subr.bf16.mxu0 0
  %184 = vmatpush1.bf16.msra.mxu0 %v150
  %185 = vmatprep.subr.bf16.mxu0 0
  %186 = vmatpush1.bf16.msra.mxu0 %v151
  %187 = vmatprep.subr.bf16.mxu0 0
  %188 = vmatpush1.bf16.msra.mxu0 %v152
  %189 = vmatprep.subr.bf16.mxu0 0
  %190 = vmatpush1.bf16.msra.mxu0 %v153
  %191 = vmatprep.subr.bf16.mxu0 0
  %192 = vmatpush1.bf16.msra.mxu0 %v154
  %193 = vmatprep.subr.bf16.mxu0 0
  %194 = vmatpush1.bf16.msra.mxu0 %v155
  %195 = vmatprep.subr.bf16.mxu0 0
  %196 = vmatpush1.bf16.msra.mxu0 %v156
  %197 = vmatprep.subr.bf16.mxu0 0
  %198 = vmatpush1.bf16.msra.mxu0 %v157
  %199 = vmatprep.subr.bf16.mxu0 0
  %200 = vmatpush1.bf16.msra.mxu0 %v158
  %201 = vmatprep.subr.bf16.mxu0 0
  %202 = vmatpush1.bf16.msra.mxu0 %v159
  %203 = vmatprep.subr.bf16.mxu0 0
  %204 = vmatpush1.bf16.msra.mxu0 %v160
  %205 = vmatprep.subr.bf16.mxu0 0
  %206 = vmatpush1.bf16.msra.mxu0 %v161
  %207 = vmatprep.subr.bf16.mxu0 0
  %208 = vmatpush1.bf16.msra.mxu0 %v162
  %209 = vmatprep.subr.bf16.mxu0 0
  %210 = vmatpush1.bf16.msra.mxu0 %v163
  %211 = vmatprep.subr.bf16.mxu0 0
  %212 = vmatpush1.bf16.msra.mxu0 %v164
  %213 = vmatprep.mubr.bf16.mxu0 %v82
  %214 = vmatmul.mubr.bf16.gmra.mrb[0].mxu0 %v81
  %v215 = vpop.f32.mrb[0].mxu0
  %v216 = vadd.f32 %v76, %v215
  %v217 = vpop.f32.mrb[0].mxu0
  %v218 = vpop.f32.mrb[0].mxu0
  %v219 = vpop.f32.mrb[0].mxu0
  %220 = vdwg.mxu0
  %vm221 = vcmp.ge.f32.partialorder %v216, 0.0
  %v222 = vmul.f32 %v216, 0.2
  %v223 = vsel %vm221, %v216, %v222
  %v224 = vpack.c.bf16 %v223, %v223
  %v225 = vld [vmem:[%s6] sm:$0xf]
  %v226 = vld [vmem:[%s6 + $0x4] sm:$0xf]
  %v227 = vld [vmem:[%s6 + $0x8] sm:$0xf]
  %v228 = vld [vmem:[%s6 + $0xc] sm:$0xf]
  %v229 = vld [vmem:[%s6 + $0x10] sm:$0xf]
  %v230 = vld [vmem:[%s6 + $0x14] sm:$0xf]
  %v231 = vld [vmem:[%s6 + $0x18] sm:$0xf]
  %v232 = vld [vmem:[%s6 + $0x1c] sm:$0xf]
  %v233 = vld [vmem:[%s6 + $0x20] sm:$0xf]
  %v234 = vld [vmem:[%s6 + $0x24] sm:$0xf]
  %v235 = vld [vmem:[%s6 + $0x28] sm:$0xf]
  %v236 = vld [vmem:[%s6 + $0x2c] sm:$0xf]
  %v237 = vld [vmem:[%s6 + $0x30] sm:$0xf]
  %v238 = vld [vmem:[%s6 + $0x34] sm:$0xf]
  %v239 = vld [vmem:[%s6 + $0x38] sm:$0xf]
  %v240 = vld [vmem:[%s6 + $0x3c] sm:$0xf]
  %v257 = vunpack.c.l.b16 %v225
  %v258 = vunpack.c.l.b16 %v226
  %v259 = vunpack.c.l.b16 %v227
  %v260 = vunpack.c.l.b16 %v228
  %v261 = vunpack.c.l.b16 %v229
  %v262 = vunpack.c.l.b16 %v230
  %v263 = vunpack.c.l.b16 %v231
  %v264 = vunpack.c.l.b16 %v232
  %v265 = vunpack.c.l.b16 %v233
  %v266 = vunpack.c.l.b16 %v234
  %v267 = vunpack.c.l.b16 %v235
  %v268 = vunpack.c.l.b16 %v236
  %v269 = vunpack.c.l.b16 %v237
  %v270 = vunpack.c.l.b16 %v238
  %v271 = vunpack.c.l.b16 %v239
  %v272 = vunpack.c.l.b16 %v240
  %v273 = vpack.c.b16 %v258, %v257
  %v274 = vpack.c.b16 %v260, %v259
  %v275 = vpack.c.b16 %v262, %v261
  %v276 = vpack.c.b16 %v264, %v263
  %v277 = vpack.c.b16 %v266, %v265
  %v278 = vpack.c.b16 %v268, %v267
  %v279 = vpack.c.b16 %v270, %v269
  %v280 = vpack.c.b16 %v272, %v271
  %289 = vmatprep.subr.bf16.mxu0 0
  %290 = vmatpush1.bf16.msra.mxu0 %v273
  %291 = vmatprep.subr.bf16.mxu0 0
  %292 = vmatpush1.bf16.msra.mxu0 %v274
  %293 = vmatprep.subr.bf16.mxu0 0
  %294 = vmatpush1.bf16.msra.mxu0 %v275
  %295 = vmatprep.subr.bf16.mxu0 0
  %296 = vmatpush1.bf16.msra.mxu0 %v276
  %297 = vmatprep.subr.bf16.mxu0 0
  %298 = vmatpush1.bf16.msra.mxu0 %v277
  %299 = vmatprep.subr.bf16.mxu0 0
  %300 = vmatpush1.bf16.msra.mxu0 %v278
  %301 = vmatprep.subr.bf16.mxu0 0
  %302 = vmatpush1.bf16.msra.mxu0 %v279
  %303 = vmatprep.subr.bf16.mxu0 0
  %304 = vmatpush1.bf16.msra.mxu0 %v280
  %305 = vmatprep.subr.bf16.mxu0 0
  %306 = vmatpush1.bf16.msra.mxu0 0
  %307 = vmatprep.subr.bf16.mxu0 0
  %308 = vmatpush1.bf16.msra.mxu0 0
  %309 = vmatprep.subr.bf16.mxu0 0
  %310 = vmatpush1.bf16.msra.mxu0 0
  %311 = vmatprep.subr.bf16.mxu0 0
  %312 = vmatpush1.bf16.msra.mxu0 0
  %313 = vmatprep.subr.bf16.mxu0 0
  %314 = vmatpush1.bf16.msra.mxu0 0
  %315 = vmatprep.subr.bf16.mxu0 0
  %316 = vmatpush1.bf16.msra.mxu0 0
  %317 = vmatprep.subr.bf16.mxu0 0
  %318 = vmatpush1.bf16.msra.mxu0 0
  %319 = vmatprep.subr.bf16.mxu0 0
  %320 = vmatpush1.bf16.msra.mxu0 0
  %321 = vmatprep.mubr.bf16.mxu0 0
  %322 = vmatmul.mubr.bf16.gmra.mrb[0].mxu0 %v224
  %v323 = vpop.f32.mrb[0].mxu0
  %v324 = vadd.f32 0.0, %v323
  %v325 = vpop.f32.mrb[0].mxu0
  %v326 = vpop.f32.mrb[0].mxu0
  %v327 = vpop.f32.mrb[0].mxu0
  %328 = vdwg.mxu0
  %v329 = vadd.f32 %v37, %v324
  %v330 = vld [vmem:[%s1] sm:$0xff]
  %v332 = vunpack.c.l.b16 %v330
  %v333 = vunpack.c.h.b16 %v330
  %v334 = vpack.c.b16 %v332, %v332
  %v335 = vpack.c.b16 %v333, %v333
  %338 = vmatprep.subr.bf16.mxu0 0
  %339 = vmatpush1.bf16.msra.mxu0 %v149
  %340 = vmatprep.subr.bf16.mxu0 0
  %341 = vmatpush1.bf16.msra.mxu0 %v150
  %342 = vmatprep.subr.bf16.mxu0 0
  %343 = vmatpush1.bf16.msra.mxu0 %v151
  %344 = vmatprep.subr.bf16.mxu0 0
  %345 = vmatpush1.bf16.msra.mxu0 %v152
  %346 = vmatprep.subr.bf16.mxu0 0
  %347 = vmatpush1.bf16.msra.mxu0 %v153
  %348 = vmatprep.subr.bf16.mxu0 0
  %349 = vmatpush1.bf16.msra.mxu0 %v154
  %350 = vmatprep.subr.bf16.mxu0 0
  %351 = vmatpush1.bf16.msra.mxu0 %v155
  %352 = vmatprep.subr.bf16.mxu0 0
  %353 = vmatpush1.bf16.msra.mxu0 %v156
  %354 = vmatprep.subr.bf16.mxu0 0
  %355 = vmatpush1.bf16.msra.mxu0 %v157
  %356 = vmatprep.subr.bf16.mxu0 0
  %357 = vmatpush1.bf16.msra.mxu0 %v158
  %358 = vmatprep.subr.bf16.mxu0 0
  %359 = vmatpush1.bf16.msra.mxu0 %v159
  %360 = vmatprep.subr.bf16.mxu0 0
  %361 = vmatpush1.bf16.msra.mxu0 %v160
  %362 = vmatprep.subr.bf16.mxu0 0
  %363 = vmatpush1.bf16.msra.mxu0 %v161
  %364 = vmatprep.subr.bf16.mxu0 0
  %365 = vmatpush1.bf16.msra.mxu0 %v162
  %366 = vmatprep.subr.bf16.mxu0 0
  %367 = vmatpush1.bf16.msra.mxu0 %v163
  %368 = vmatprep.subr.bf16.mxu0 0
  %369 = vmatpush1.bf16.msra.mxu0 %v164
  %370 = vmatprep.mubr.bf16.mxu0 %v335
  %371 = vmatmul.mubr.bf16.gmra.mrb[0].mxu0 %v334
  %v372 = vpop.f32.mrb[0].mxu0
  %v373 = vadd.f32 %v76, %v372
  %v374 = vpop.f32.mrb[0].mxu0
  %v375 = vpop.f32.mrb[0].mxu0
  %v376 = vpop.f32.mrb[0].mxu0
  %377 = vdwg.mxu0
  %vm378 = vcmp.ge.f32.partialorder %v373, 0.0
  %v379 = vmul.f32 %v373, 0.2
  %v380 = vsel %vm378, %v373, %v379
  %v381 = vpack.c.bf16 %v380, %v380
  %s382 = scalar_lea.vmem %s6, 64
  %v383 = vld [vmem:[%s382] sm:$0xf]
  %v384 = vld [vmem:[%s382 + $0x4] sm:$0xf]
  %v385 = vld [vmem:[%s382 + $0x8] sm:$0xf]
  %v386 = vld [vmem:[%s382 + $0xc] sm:$0xf]
  %v387 = vld [vmem:[%s382 + $0x10] sm:$0xf]
  %v388 = vld [vmem:[%s382 + $0x14] sm:$0xf]
  %v389 = vld [vmem:[%s382 + $0x18] sm:$0xf]
  %v390 = vld [vmem:[%s382 + $0x1c] sm:$0xf]
  %v391 = vld [vmem:[%s382 + $0x20] sm:$0xf]
  %v392 = vld [vmem:[%s382 + $0x24] sm:$0xf]
  %v393 = vld [vmem:[%s382 + $0x28] sm:$0xf]
  %v394 = vld [vmem:[%s382 + $0x2c] sm:$0xf]
  %v395 = vld [vmem:[%s382 + $0x30] sm:$0xf]
  %v396 = vld [vmem:[%s382 + $0x34] sm:$0xf]
  %v397 = vld [vmem:[%s382 + $0x38] sm:$0xf]
  %v398 = vld [vmem:[%s382 + $0x3c] sm:$0xf]
  %v415 = vunpack.c.l.b16 %v383
  %v416 = vunpack.c.l.b16 %v384
  %v417 = vunpack.c.l.b16 %v385
  %v418 = vunpack.c.l.b16 %v386
  %v419 = vunpack.c.l.b16 %v387
  %v420 = vunpack.c.l.b16 %v388
  %v421 = vunpack.c.l.b16 %v389
  %v422 = vunpack.c.l.b16 %v390
  %v423 = vunpack.c.l.b16 %v391
  %v424 = vunpack.c.l.b16 %v392
  %v425 = vunpack.c.l.b16 %v393
  %v426 = vunpack.c.l.b16 %v394
  %v427 = vunpack.c.l.b16 %v395
  %v428 = vunpack.c.l.b16 %v396
  %v429 = vunpack.c.l.b16 %v397
  %v430 = vunpack.c.l.b16 %v398
  %v431 = vpack.c.b16 %v416, %v415
  %v432 = vpack.c.b16 %v418, %v417
  %v433 = vpack.c.b16 %v420, %v419
  %v434 = vpack.c.b16 %v422, %v421
  %v435 = vpack.c.b16 %v424, %v423
  %v436 = vpack.c.b16 %v426, %v425
  %v437 = vpack.c.b16 %v428, %v427
  %v438 = vpack.c.b16 %v430, %v429
  %447 = vmatprep.subr.bf16.mxu0 0
  %448 = vmatpush1.bf16.msra.mxu0 %v431
  %449 = vmatprep.subr.bf16.mxu0 0
  %450 = vmatpush1.bf16.msra.mxu0 %v432
  %451 = vmatprep.subr.bf16.mxu0 0
  %452 = vmatpush1.bf16.msra.mxu0 %v433
  %453 = vmatprep.subr.bf16.mxu0 0
  %454 = vmatpush1.bf16.msra.mxu0 %v434
  %455 = vmatprep.subr.bf16.mxu0 0
  %456 = vmatpush1.bf16.msra.mxu0 %v435
  %457 = vmatprep.subr.bf16.mxu0 0
  %458 = vmatpush1.bf16.msra.mxu0 %v436
  %459 = vmatprep.subr.bf16.mxu0 0
  %460 = vmatpush1.bf16.msra.mxu0 %v437
  %461 = vmatprep.subr.bf16.mxu0 0
  %462 = vmatpush1.bf16.msra.mxu0 %v438
  %463 = vmatprep.subr.bf16.mxu0 0
  %464 = vmatpush1.bf16.msra.mxu0 0
  %465 = vmatprep.subr.bf16.mxu0 0
  %466 = vmatpush1.bf16.msra.mxu0 0
  %467 = vmatprep.subr.bf16.mxu0 0
  %468 = vmatpush1.bf16.msra.mxu0 0
  %469 = vmatprep.subr.bf16.mxu0 0
  %470 = vmatpush1.bf16.msra.mxu0 0
  %471 = vmatprep.subr.bf16.mxu0 0
  %472 = vmatpush1.bf16.msra.mxu0 0
  %473 = vmatprep.subr.bf16.mxu0 0
  %474 = vmatpush1.bf16.msra.mxu0 0
  %475 = vmatprep.subr.bf16.mxu0 0
  %476 = vmatpush1.bf16.msra.mxu0 0
  %477 = vmatprep.subr.bf16.mxu0 0
  %478 = vmatpush1.bf16.msra.mxu0 0
  %479 = vmatprep.mubr.bf16.mxu0 0
  %480 = vmatmul.mubr.bf16.gmra.mrb[0].mxu0 %v381
  %v481 = vpop.f32.mrb[0].mxu0
  %v482 = vadd.f32 0.0, %v481
  %v483 = vpop.f32.mrb[0].mxu0
  %v484 = vpop.f32.mrb[0].mxu0
  %v485 = vpop.f32.mrb[0].mxu0
  %486 = vdwg.mxu0
  %v487 = vadd.f32 %v329, %v482
  %v488 = vld [vmem:[%s2] sm:$0xff]
  %v490 = vunpack.c.l.b16 %v488
  %v491 = vunpack.c.h.b16 %v488
  %v492 = vpack.c.b16 %v490, %v490
  %v493 = vpack.c.b16 %v491, %v491
  %496 = vmatprep.subr.bf16.mxu0 0
  %497 = vmatpush1.bf16.msra.mxu0 %v149
  %498 = vmatprep.subr.bf16.mxu0 0
  %499 = vmatpush1.bf16.msra.mxu0 %v150
  %500 = vmatprep.subr.bf16.mxu0 0
  %501 = vmatpush1.bf16.msra.mxu0 %v151
  %502 = vmatprep.subr.bf16.mxu0 0
  %503 = vmatpush1.bf16.msra.mxu0 %v152
  %504 = vmatprep.subr.bf16.mxu0 0
  %505 = vmatpush1.bf16.msra.mxu0 %v153
  %506 = vmatprep.subr.bf16.mxu0 0
  %507 = vmatpush1.bf16.msra.mxu0 %v154
  %508 = vmatprep.subr.bf16.mxu0 0
  %509 = vmatpush1.bf16.msra.mxu0 %v155
  %510 = vmatprep.subr.bf16.mxu0 0
  %511 = vmatpush1.bf16.msra.mxu0 %v156
  %512 = vmatprep.subr.bf16.mxu0 0
  %513 = vmatpush1.bf16.msra.mxu0 %v157
  %514 = vmatprep.subr.bf16.mxu0 0
  %515 = vmatpush1.bf16.msra.mxu0 %v158
  %516 = vmatprep.subr.bf16.mxu0 0
  %517 = vmatpush1.bf16.msra.mxu0 %v159
  %518 = vmatprep.subr.bf16.mxu0 0
  %519 = vmatpush1.bf16.msra.mxu0 %v160
  %520 = vmatprep.subr.bf16.mxu0 0
  %521 = vmatpush1.bf16.msra.mxu0 %v161
  %522 = vmatprep.subr.bf16.mxu0 0
  %523 = vmatpush1.bf16.msra.mxu0 %v162
  %524 = vmatprep.subr.bf16.mxu0 0
  %525 = vmatpush1.bf16.msra.mxu0 %v163
  %526 = vmatprep.subr.bf16.mxu0 0
  %527 = vmatpush1.bf16.msra.mxu0 %v164
  %528 = vmatprep.mubr.bf16.mxu0 %v493
  %529 = vmatmul.mubr.bf16.gmra.mrb[0].mxu0 %v492
  %v530 = vpop.f32.mrb[0].mxu0
  %v531 = vadd.f32 %v76, %v530
  %v532 = vpop.f32.mrb[0].mxu0
  %v533 = vpop.f32.mrb[0].mxu0
  %v534 = vpop.f32.mrb[0].mxu0
  %535 = vdwg.mxu0
  %vm536 = vcmp.ge.f32.partialorder %v531, 0.0
  %v537 = vmul.f32 %v531, 0.2
  %v538 = vsel %vm536, %v531, %v537
  %v539 = vpack.c.bf16 %v538, %v538
  %s540 = scalar_lea.vmem %s6, 128
  %v541 = vld [vmem:[%s540] sm:$0xf]
  %v542 = vld [vmem:[%s540 + $0x4] sm:$0xf]
  %v543 = vld [vmem:[%s540 + $0x8] sm:$0xf]
  %v544 = vld [vmem:[%s540 + $0xc] sm:$0xf]
  %v545 = vld [vmem:[%s540 + $0x10] sm:$0xf]
  %v546 = vld [vmem:[%s540 + $0x14] sm:$0xf]
  %v547 = vld [vmem:[%s540 + $0x18] sm:$0xf]
  %v548 = vld [vmem:[%s540 + $0x1c] sm:$0xf]
  %v549 = vld [vmem:[%s540 + $0x20] sm:$0xf]
  %v550 = vld [vmem:[%s540 + $0x24] sm:$0xf]
  %v551 = vld [vmem:[%s540 + $0x28] sm:$0xf]
  %v552 = vld [vmem:[%s540 + $0x2c] sm:$0xf]
  %v553 = vld [vmem:[%s540 + $0x30] sm:$0xf]
  %v554 = vld [vmem:[%s540 + $0x34] sm:$0xf]
  %v555 = vld [vmem:[%s540 + $0x38] sm:$0xf]
  %v556 = vld [vmem:[%s540 + $0x3c] sm:$0xf]
  %v573 = vunpack.c.l.b16 %v541
  %v574 = vunpack.c.l.b16 %v542
  %v575 = vunpack.c.l.b16 %v543
  %v576 = vunpack.c.l.b16 %v544
  %v577 = vunpack.c.l.b16 %v545
  %v578 = vunpack.c.l.b16 %v546
  %v579 = vunpack.c.l.b16 %v547
  %v580 = vunpack.c.l.b16 %v548
  %v581 = vunpack.c.l.b16 %v549
  %v582 = vunpack.c.l.b16 %v550
  %v583 = vunpack.c.l.b16 %v551
  %v584 = vunpack.c.l.b16 %v552
  %v585 = vunpack.c.l.b16 %v553
  %v586 = vunpack.c.l.b16 %v554
  %v587 = vunpack.c.l.b16 %v555
  %v588 = vunpack.c.l.b16 %v556
  %v589 = vpack.c.b16 %v574, %v573
  %v590 = vpack.c.b16 %v576, %v575
  %v591 = vpack.c.b16 %v578, %v577
  %v592 = vpack.c.b16 %v580, %v579
  %v593 = vpack.c.b16 %v582, %v581
  %v594 = vpack.c.b16 %v584, %v583
  %v595 = vpack.c.b16 %v586, %v585
  %v596 = vpack.c.b16 %v588, %v587
  %605 = vmatprep.subr.bf16.mxu0 0
  %606 = vmatpush1.bf16.msra.mxu0 %v589
  %607 = vmatprep.subr.bf16.mxu0 0
  %608 = vmatpush1.bf16.msra.mxu0 %v590
  %609 = vmatprep.subr.bf16.mxu0 0
  %610 = vmatpush1.bf16.msra.mxu0 %v591
  %611 = vmatprep.subr.bf16.mxu0 0
  %612 = vmatpush1.bf16.msra.mxu0 %v592
  %613 = vmatprep.subr.bf16.mxu0 0
  %614 = vmatpush1.bf16.msra.mxu0 %v593
  %615 = vmatprep.subr.bf16.mxu0 0
  %616 = vmatpush1.bf16.msra.mxu0 %v594
  %617 = vmatprep.subr.bf16.mxu0 0
  %618 = vmatpush1.bf16.msra.mxu0 %v595
  %619 = vmatprep.subr.bf16.mxu0 0
  %620 = vmatpush1.bf16.msra.mxu0 %v596
  %621 = vmatprep.subr.bf16.mxu0 0
  %622 = vmatpush1.bf16.msra.mxu0 0
  %623 = vmatprep.subr.bf16.mxu0 0
  %624 = vmatpush1.bf16.msra.mxu0 0
  %625 = vmatprep.subr.bf16.mxu0 0
  %626 = vmatpush1.bf16.msra.mxu0 0
  %627 = vmatprep.subr.bf16.mxu0 0
  %628 = vmatpush1.bf16.msra.mxu0 0
  %629 = vmatprep.subr.bf16.mxu0 0
  %630 = vmatpush1.bf16.msra.mxu0 0
  %631 = vmatprep.subr.bf16.mxu0 0
  %632 = vmatpush1.bf16.msra.mxu0 0
  %633 = vmatprep.subr.bf16.mxu0 0
  %634 = vmatpush1.bf16.msra.mxu0 0
  %635 = vmatprep.subr.bf16.mxu0 0
  %636 = vmatpush1.bf16.msra.mxu0 0
  %637 = vmatprep.mubr.bf16.mxu0 0
  %638 = vmatmul.mubr.bf16.gmra.mrb[0].mxu0 %v539
  %v639 = vpop.f32.mrb[0].mxu0
  %v640 = vadd.f32 0.0, %v639
  %v641 = vpop.f32.mrb[0].mxu0
  %v642 = vpop.f32.mrb[0].mxu0
  %v643 = vpop.f32.mrb[0].mxu0
  %644 = vdwg.mxu0
  %v645 = vadd.f32 %v487, %v640
  %v646 = vld [vmem:[%s3] sm:$0xff]
  %v648 = vunpack.c.l.b16 %v646
  %v649 = vunpack.c.h.b16 %v646
  %v650 = vpack.c.b16 %v648, %v648
  %v651 = vpack.c.b16 %v649, %v649
  %654 = vmatprep.subr.bf16.mxu0 0
  %655 = vmatpush1.bf16.msra.mxu0 %v149
  %656 = vmatprep.subr.bf16.mxu0 0
  %657 = vmatpush1.bf16.msra.mxu0 %v150
  %658 = vmatprep.subr.bf16.mxu0 0
  %659 = vmatpush1.bf16.msra.mxu0 %v151
  %660 = vmatprep.subr.bf16.mxu0 0
  %661 = vmatpush1.bf16.msra.mxu0 %v152
  %662 = vmatprep.subr.bf16.mxu0 0
  %663 = vmatpush1.bf16.msra.mxu0 %v153
  %664 = vmatprep.subr.bf16.mxu0 0
  %665 = vmatpush1.bf16.msra.mxu0 %v154
  %666 = vmatprep.subr.bf16.mxu0 0
  %667 = vmatpush1.bf16.msra.mxu0 %v155
  %668 = vmatprep.subr.bf16.mxu0 0
  %669 = vmatpush1.bf16.msra.mxu0 %v156
  %670 = vmatprep.subr.bf16.mxu0 0
  %671 = vmatpush1.bf16.msra.mxu0 %v157
  %672 = vmatprep.subr.bf16.mxu0 0
  %673 = vmatpush1.bf16.msra.mxu0 %v158
  %674 = vmatprep.subr.bf16.mxu0 0
  %675 = vmatpush1.bf16.msra.mxu0 %v159
  %676 = vmatprep.subr.bf16.mxu0 0
  %677 = vmatpush1.bf16.msra.mxu0 %v160
  %678 = vmatprep.subr.bf16.mxu0 0
  %679 = vmatpush1.bf16.msra.mxu0 %v161
  %680 = vmatprep.subr.bf16.mxu0 0
  %681 = vmatpush1.bf16.msra.mxu0 %v162
  %682 = vmatprep.subr.bf16.mxu0 0
  %683 = vmatpush1.bf16.msra.mxu0 %v163
  %684 = vmatprep.subr.bf16.mxu0 0
  %685 = vmatpush1.bf16.msra.mxu0 %v164
  %686 = vmatprep.mubr.bf16.mxu0 %v651
  %687 = vmatmul.mubr.bf16.gmra.mrb[0].mxu0 %v650
  %v688 = vpop.f32.mrb[0].mxu0
  %v689 = vadd.f32 %v76, %v688
  %v690 = vpop.f32.mrb[0].mxu0
  %v691 = vpop.f32.mrb[0].mxu0
  %v692 = vpop.f32.mrb[0].mxu0
  %693 = vdwg.mxu0
  %vm694 = vcmp.ge.f32.partialorder %v689, 0.0
  %v695 = vmul.f32 %v689, 0.2
  %v696 = vsel %vm694, %v689, %v695
  %v697 = vpack.c.bf16 %v696, %v696
  %s698 = scalar_lea.vmem %s6, 192
  %v699 = vld [vmem:[%s698] sm:$0xf]
  %v700 = vld [vmem:[%s698 + $0x4] sm:$0xf]
  %v701 = vld [vmem:[%s698 + $0x8] sm:$0xf]
  %v702 = vld [vmem:[%s698 + $0xc] sm:$0xf]
  %v703 = vld [vmem:[%s698 + $0x10] sm:$0xf]
  %v704 = vld [vmem:[%s698 + $0x14] sm:$0xf]
  %v705 = vld [vmem:[%s698 + $0x18] sm:$0xf]
  %v706 = vld [vmem:[%s698 + $0x1c] sm:$0xf]
  %v707 = vld [vmem:[%s698 + $0x20] sm:$0xf]
  %v708 = vld [vmem:[%s698 + $0x24] sm:$0xf]
  %v709 = vld [vmem:[%s698 + $0x28] sm:$0xf]
  %v710 = vld [vmem:[%s698 + $0x2c] sm:$0xf]
  %v711 = vld [vmem:[%s698 + $0x30] sm:$0xf]
  %v712 = vld [vmem:[%s698 + $0x34] sm:$0xf]
  %v713 = vld [vmem:[%s698 + $0x38] sm:$0xf]
  %v714 = vld [vmem:[%s698 + $0x3c] sm:$0xf]
  %v731 = vunpack.c.l.b16 %v699
  %v732 = vunpack.c.l.b16 %v700
  %v733 = vunpack.c.l.b16 %v701
  %v734 = vunpack.c.l.b16 %v702
  %v735 = vunpack.c.l.b16 %v703
  %v736 = vunpack.c.l.b16 %v704
  %v737 = vunpack.c.l.b16 %v705
  %v738 = vunpack.c.l.b16 %v706
  %v739 = vunpack.c.l.b16 %v707
  %v740 = vunpack.c.l.b16 %v708
  %v741 = vunpack.c.l.b16 %v709
  %v742 = vunpack.c.l.b16 %v710
  %v743 = vunpack.c.l.b16 %v711
  %v744 = vunpack.c.l.b16 %v712
  %v745 = vunpack.c.l.b16 %v713
  %v746 = vunpack.c.l.b16 %v714
  %v747 = vpack.c.b16 %v732, %v731
  %v748 = vpack.c.b16 %v734, %v733
  %v749 = vpack.c.b16 %v736, %v735
  %v750 = vpack.c.b16 %v738, %v737
  %v751 = vpack.c.b16 %v740, %v739
  %v752 = vpack.c.b16 %v742, %v741
  %v753 = vpack.c.b16 %v744, %v743
  %v754 = vpack.c.b16 %v746, %v745
  %763 = vmatprep.subr.bf16.mxu0 0
  %764 = vmatpush1.bf16.msra.mxu0 %v747
  %765 = vmatprep.subr.bf16.mxu0 0
  %766 = vmatpush1.bf16.msra.mxu0 %v748
  %767 = vmatprep.subr.bf16.mxu0 0
  %768 = vmatpush1.bf16.msra.mxu0 %v749
  %769 = vmatprep.subr.bf16.mxu0 0
  %770 = vmatpush1.bf16.msra.mxu0 %v750
  %771 = vmatprep.subr.bf16.mxu0 0
  %772 = vmatpush1.bf16.msra.mxu0 %v751
  %773 = vmatprep.subr.bf16.mxu0 0
  %774 = vmatpush1.bf16.msra.mxu0 %v752
  %775 = vmatprep.subr.bf16.mxu0 0
  %776 = vmatpush1.bf16.msra.mxu0 %v753
  %777 = vmatprep.subr.bf16.mxu0 0
  %778 = vmatpush1.bf16.msra.mxu0 %v754
  %779 = vmatprep.subr.bf16.mxu0 0
  %780 = vmatpush1.bf16.msra.mxu0 0
  %781 = vmatprep.subr.bf16.mxu0 0
  %782 = vmatpush1.bf16.msra.mxu0 0
  %783 = vmatprep.subr.bf16.mxu0 0
  %784 = vmatpush1.bf16.msra.mxu0 0
  %785 = vmatprep.subr.bf16.mxu0 0
  %786 = vmatpush1.bf16.msra.mxu0 0
  %787 = vmatprep.subr.bf16.mxu0 0
  %788 = vmatpush1.bf16.msra.mxu0 0
  %789 = vmatprep.subr.bf16.mxu0 0
  %790 = vmatpush1.bf16.msra.mxu0 0
  %791 = vmatprep.subr.bf16.mxu0 0
  %792 = vmatpush1.bf16.msra.mxu0 0
  %793 = vmatprep.subr.bf16.mxu0 0
  %794 = vmatpush1.bf16.msra.mxu0 0
  %795 = vmatprep.mubr.bf16.mxu0 0
  %796 = vmatmul.mubr.bf16.gmra.mrb[0].mxu0 %v697
  %v797 = vpop.f32.mrb[0].mxu0
  %v798 = vadd.f32 0.0, %v797
  %v799 = vpop.f32.mrb[0].mxu0
  %v800 = vpop.f32.mrb[0].mxu0
  %v801 = vpop.f32.mrb[0].mxu0
  %802 = vdwg.mxu0
  %v803 = vadd.f32 %v645, %v798
  %804 = vst [vmem:[%s8] sm:$0xff] %v803
  // Predicated region
  $region34: #{conv_discriminator_forward.5} parent=0 // pred_check
    _
  $region35: #{conv_discriminator_forward.5} parent=0 // pred_check_branch
    %806 = sbr.rel (0) target = $region37
  $region36: #{conv_discriminator_forward.5} parent=0 // pred_region
    _
  $region37: #{conv_discriminator_forward.5} parent=0 // pred_fallthru
    _
  // Predicated region
  $region38: #{conv_discriminator_forward.5} parent=0 // pred_check
    _
  $region39: #{conv_discriminator_forward.5} parent=0 // pred_check_branch
    %808 = sbr.rel (0) target = $region41
  $region40: #{conv_discriminator_forward.5} parent=0 // pred_region
    _
  $region41: #{conv_discriminator_forward.5} parent=0 // pred_fallthru
    _

</llo_original>
